<compile_context>
chip_gen: v6e
topology: v6e:2x2x1
jax: 0.10.0
libtpu: 0.0.40
codegen_flags: <defaults>
</compile_context>

<pallas_src>
import functools

import jax
import jax.numpy as jnp
from jax import lax
from jax.experimental import pallas as pl
from jax.experimental.pallas import tpu as pltpu

_INV_SQRT2 = 0.7071067811865476
# Abramowitz–Stegun 7.1.26 erf coefficients, pre-scaled by 0.5 so the Horner
# chain (times exp(-u^2)) directly yields 0.5*(1 - erf(|u|)).
_AS_P = 0.3275911
_AS_A1 = 0.5 * 0.254829592
_AS_A2 = 0.5 * -0.284496736
_AS_A3 = 0.5 * 1.421413741
_AS_A4 = 0.5 * -1.453152027
_AS_A5 = 0.5 * 1.061405429


def _mlp_kernel(x_ref, w_ref, b_ref, o_ref, *, eps, inv_c):
    """One (C, tm) token tile: LayerNorm -> Linear -> GELU, channel-major."""
    x = x_ref[...].astype(jnp.float32)                        # (C, tm)
    c = x.shape[0]
    ones_row = jnp.ones((1, c), dtype=jnp.float32)

    # LayerNorm statistics on the MXU (keeps VALU/XLU slots free on v7x).
    s = jnp.dot(ones_row, x, preferred_element_type=jnp.float32,
                precision=lax.Precision.HIGHEST)               # (1, tm)
    mu = s * inv_c
    xc = x - mu                                                # centered activations
    ss = jnp.dot(ones_row, xc * xc, preferred_element_type=jnp.float32,
                 precision=lax.Precision.HIGHEST)              # (1, tm) two-pass var*C
    inv = lax.rsqrt(ss * inv_c + eps)                          # (1, tm) = 1/sigma

    # (W*gamma) @ (x - mu); the per-token 1/sigma commutes out of the matmul.
    w = w_ref[...].astype(jnp.float32)                         # (E, C)
    z = jnp.dot(w, xc, preferred_element_type=jnp.float32,
                precision=lax.Precision.HIGHEST)               # (E, tm)
    y = z * inv + b_ref[...].astype(jnp.float32)               # (E, tm)

    # Exact-erf GELU: y * Phi(y), Phi via A&S 7.1.26 (one EUP exp + Horner).
    a = jnp.abs(y) * _INV_SQRT2
    t = 1.0 / (1.0 + _AS_P * a)
    h = t * (_AS_A1 + t * (_AS_A2 + t * (_AS_A3 + t * (_AS_A4 + t * _AS_A5))))
    h = h * jnp.exp(-(a * a))                                  # 0.5*(1 - erf(|u|))
    cdf = jnp.where(y < 0.0, h, 1.0 - h)
    o_ref[...] = (y * cdf).astype(o_ref.dtype)


def mlp_forward(x_nchw, weight, bias, gamma, beta, *, eps=1e-5,
                token_major_out=True, tile_budget_bytes=12 * 2**20,
                tm_cap=32768):
    """Forward of MLP(input_dim=C, embed_dim=E, norm_act=True).

    x_nchw: (B, C, H, W); weight: (E, C); bias: (E,); gamma/beta: (C,).
    Returns (B, H*W, E) (module layout) or, with token_major_out=False, the
    kernel-native channel-major (B, E, H*W) without the extra HBM pass.
    """
    B, C, H, W = x_nchw.shape
    E = weight.shape[0]
    HW = H * W

    x_chw = x_nchw.reshape(B, C, HW)      # free contiguous view, no transpose

    # Fold the LayerNorm affine into the Linear (tiny wrapper-side arrays).
    hi = lax.Precision.HIGHEST
    w_eff = (weight * gamma[None, :]).astype(jnp.float32)                  # (E, C)
    b_eff = (bias + jnp.dot(weight, beta, precision=hi)).reshape(E, 1)
    b_eff = b_eff.astype(jnp.float32)                                      # (E, 1)

    # ---- Token tile from a VMEM budget (biggest lever for this HBM-bound
    # kernel): double-buffered x tile (C rows) + out tile (E rows) per token.
    in_b = jnp.dtype(x_nchw.dtype).itemsize
    out_b = in_b
    per_token = 2 * (C * in_b + E * out_b)
    tm = int(tile_budget_bytes // per_token)
    tm = max(128, min(tm, tm_cap))
    tm = (tm // 128) * 128
    if tm >= HW:
        tm = HW
    # v7x megacore: ensure >= 2 independent grid steps when B == 1.
    if B == 1 and tm >= HW and HW > 128:
        tm = min(HW, ((HW + 1) // 2 + 127) // 128 * 128)
    n_j = pl.cdiv(HW, tm)

    # ---- Per-generation VMEM budget (~0.75x physical; ~48 MiB on v7x,
    # ~96 MiB on v5e/v6e) instead of a fixed cap.
    try:
        vmem_cap = int(pltpu.get_tpu_info().vmem_capacity_bytes)
    except Exception:
        vmem_cap = 64 * 2**20                      # conservative: v7x physical
    vmem_limit = max(16 * 2**20, int(0.75 * vmem_cap))

    out_t = pl.pallas_call(
        functools.partial(_mlp_kernel, eps=float(eps), inv_c=1.0 / C),
        out_shape=jax.ShapeDtypeStruct((B, E, HW), x_nchw.dtype),
        grid_spec=pltpu.PrefetchScalarGridSpec(
            num_scalar_prefetch=0,
            grid=(B, n_j),
            in_specs=[
                pl.BlockSpec((None, C, tm), lambda b, j: (b, 0, j)),  # x tile
                pl.BlockSpec((E, C), lambda b, j: (0, 0)),            # W*gamma
                pl.BlockSpec((E, 1), lambda b, j: (0, 0)),            # folded bias
            ],
            out_specs=pl.BlockSpec((None, E, tm), lambda b, j: (b, 0, j)),
        ),
        compiler_params=pltpu.CompilerParams(
            dimension_semantics=("parallel", "parallel"),
            vmem_limit_bytes=vmem_limit),
    )(x_chw, w_eff, b_eff)

    if not token_major_out:
        return out_t                                # (B, E, H*W): no extra pass
    # (B, E, HW) -> (B, HW, E): module layout; touches only the output, which
    # is E/C times smaller than the input (lane-dense in-kernel stores kept).
    return jnp.transpose(out_t, (0, 2, 1))


if __name__ == "__main__":
    # Small shapes consistent with the module: input_dim=C=32, embed_dim=E=16.
    B, C, H, W = 2, 32, 16, 16
    E = 16
    eps = 1e-5

    key = jax.random.PRNGKey(0)
    kx, kw, kb, kg, kbe = jax.random.split(key, 5)

    x = jax.random.normal(kx, (B, C, H, W), dtype=jnp.float32)

    # Synthetic, deterministic parameters (not a checkpoint load).
    bound = 1.0 / jnp.sqrt(jnp.float32(C))
    weight = jax.random.uniform(kw, (E, C), jnp.float32, -bound, bound)   # nn.Linear.weight
    bias = jax.random.uniform(kb, (E,), jnp.float32, -bound, bound)       # nn.Linear.bias
    # Non-trivial LayerNorm affine so the folded path is actually exercised.
    gamma = 1.0 + 0.1 * jax.random.normal(kg, (C,), dtype=jnp.float32)
    beta = 0.1 * jax.random.normal(kbe, (C,), dtype=jnp.float32)

    out = mlp_forward(x, weight, bias, gamma, beta, eps=eps)
    out = jax.block_until_ready(out)
    assert out.shape == (B, H * W, E)

    # Reference: the PyTorch forward written in plain JAX (HIGHEST-precision
    # matmul so the reference itself is not bf16-truncated on TPU).
    x_tok = jnp.transpose(x.reshape(B, C, H * W), (0, 2, 1))       # (B, HW, C)
    mu = jnp.mean(x_tok, axis=-1, keepdims=True)
    var = jnp.mean((x_tok - mu) ** 2, axis=-1, keepdims=True)
    xn = (x_tok - mu) / jnp.sqrt(var + eps) * gamma + beta
    y_ref = jnp.einsum("btc,ec->bte", xn, weight,
                       precision=lax.Precision.HIGHEST) + bias
    y_ref = 0.5 * y_ref * (1.0 + lax.erf(y_ref * 0.7071067811865476))

    err = jnp.max(jnp.abs(out - y_ref))
    assert jnp.allclose(out, y_ref, atol=2e-3, rtol=2e-3), f"max abs err {err}"

    print("KERNEL_OK")
</pallas_src>

<mosaic_0001>
module attributes {stable_mosaic.version = 11 : i64} {
  func.func @_mlp_kernel(%arg0: i32, %arg1: i32, %arg2: memref<1x32x256xf32, #tpu.memory_space<vmem>>, %arg3: memref<16x32xf32, #tpu.memory_space<vmem>>, %arg4: memref<16x1xf32, #tpu.memory_space<vmem>>, %arg5: memref<1x16x256xf32, #tpu.memory_space<vmem>>) attributes {dimension_semantics = [#tpu.dimension_semantics<parallel>, #tpu.dimension_semantics<parallel>], iteration_bounds = array<i64: 2, 1>, scalar_prefetch = 0 : i64, scratch_operands = 0 : i64, tpu.core_type = #tpu.core_type<tc>, window_params = [{transform_indices = @transform_0, window_bounds = array<i64: 1, 32, 256>}, {pipeline_mode = #tpu.pipeline_mode<synchronous>, transform_indices = @transform_1, window_bounds = array<i64: 16, 32>}, {pipeline_mode = #tpu.pipeline_mode<synchronous>, transform_indices = @transform_2, window_bounds = array<i64: 16, 1>}, {transform_indices = @transform_3, window_bounds = array<i64: 1, 16, 256>}]} {
    %c0 = arith.constant 0 : index
    %c0_0 = arith.constant 0 : index
    %c0_1 = arith.constant 0 : index
    %0 = vector.load %arg2[%c0, %c0_0, %c0_1] : memref<1x32x256xf32, #tpu.memory_space<vmem>>, vector<1x32x256xf32>
    %1 = vector.shape_cast %0 : vector<1x32x256xf32> to vector<32x256xf32>
    %cst = arith.constant 1.000000e+00 : f32
    %2 = vector.broadcast %cst : f32 to vector<1x32xf32>
    %cst_2 = arith.constant dense<0.000000e+00> : vector<1x256xf32>
    %3 = tpu.matmul %2, %1, %cst_2 {dimension_numbers = #tpu.dot_dimension_numbers<[1], [0], [0], [1], [0, 0, 1, 1], [], []>, precision = #tpu.contract_precision<fp32>} : vector<1x32xf32>, vector<32x256xf32>, vector<1x256xf32> -> vector<1x256xf32>
    %cst_3 = arith.constant 3.125000e-02 : f32
    %4 = vector.broadcast %cst_3 : f32 to vector<1x256xf32>
    %5 = arith.mulf %3, %4 : vector<1x256xf32>
    %6 = vector.broadcast %5 : vector<1x256xf32> to vector<32x256xf32>
    %7 = arith.subf %1, %6 : vector<32x256xf32>
    %8 = arith.mulf %7, %7 : vector<32x256xf32>
    %cst_4 = arith.constant dense<0.000000e+00> : vector<1x256xf32>
    %9 = tpu.matmul %2, %8, %cst_4 {dimension_numbers = #tpu.dot_dimension_numbers<[1], [0], [0], [1], [0, 0, 1, 1], [], []>, precision = #tpu.contract_precision<fp32>} : vector<1x32xf32>, vector<32x256xf32>, vector<1x256xf32> -> vector<1x256xf32>
    %cst_5 = arith.constant 3.125000e-02 : f32
    %10 = vector.broadcast %cst_5 : f32 to vector<1x256xf32>
    %11 = arith.mulf %9, %10 : vector<1x256xf32>
    %cst_6 = arith.constant 9.99999974E-6 : f32
    %12 = vector.broadcast %cst_6 : f32 to vector<1x256xf32>
    %13 = arith.addf %11, %12 : vector<1x256xf32>
    %14 = math.rsqrt %13 : vector<1x256xf32>
    %c0_7 = arith.constant 0 : index
    %c0_8 = arith.constant 0 : index
    %15 = vector.load %arg3[%c0_7, %c0_8] : memref<16x32xf32, #tpu.memory_space<vmem>>, vector<16x32xf32>
    %cst_9 = arith.constant dense<0.000000e+00> : vector<16x256xf32>
    %16 = tpu.matmul %15, %7, %cst_9 {dimension_numbers = #tpu.dot_dimension_numbers<[1], [0], [0], [1], [0, 0, 1, 1], [], []>, precision = #tpu.contract_precision<fp32>} : vector<16x32xf32>, vector<32x256xf32>, vector<16x256xf32> -> vector<16x256xf32>
    %17 = vector.broadcast %14 : vector<1x256xf32> to vector<16x256xf32>
    %18 = arith.mulf %16, %17 : vector<16x256xf32>
    %c0_10 = arith.constant 0 : index
    %c0_11 = arith.constant 0 : index
    %19 = vector.load %arg4[%c0_10, %c0_11] : memref<16x1xf32, #tpu.memory_space<vmem>>, vector<16x1xf32>
    %20 = vector.broadcast %19 : vector<16x1xf32> to vector<16x256xf32>
    %21 = arith.addf %18, %20 : vector<16x256xf32>
    %22 = math.absf %21 : vector<16x256xf32>
    %cst_12 = arith.constant 0.707106769 : f32
    %23 = vector.broadcast %cst_12 : f32 to vector<16x256xf32>
    %24 = arith.mulf %22, %23 : vector<16x256xf32>
    %cst_13 = arith.constant 0.327591091 : f32
    %25 = vector.broadcast %cst_13 : f32 to vector<16x256xf32>
    %26 = arith.mulf %25, %24 : vector<16x256xf32>
    %cst_14 = arith.constant 1.000000e+00 : f32
    %27 = vector.broadcast %cst_14 : f32 to vector<16x256xf32>
    %28 = arith.addf %27, %26 : vector<16x256xf32>
    %cst_15 = arith.constant 1.000000e+00 : f32
    %29 = vector.broadcast %cst_15 : f32 to vector<16x256xf32>
    %30 = arith.divf %29, %28 : vector<16x256xf32>
    %cst_16 = arith.constant 0.53070271 : f32
    %31 = vector.broadcast %cst_16 : f32 to vector<16x256xf32>
    %32 = arith.mulf %30, %31 : vector<16x256xf32>
    %cst_17 = arith.constant -0.72657603 : f32
    %33 = vector.broadcast %cst_17 : f32 to vector<16x256xf32>
    %34 = arith.addf %33, %32 : vector<16x256xf32>
    %35 = arith.mulf %30, %34 : vector<16x256xf32>
    %cst_18 = arith.constant 0.710706889 : f32
    %36 = vector.broadcast %cst_18 : f32 to vector<16x256xf32>
    %37 = arith.addf %36, %35 : vector<16x256xf32>
    %38 = arith.mulf %30, %37 : vector<16x256xf32>
    %cst_19 = arith.constant -0.142248362 : f32
    %39 = vector.broadcast %cst_19 : f32 to vector<16x256xf32>
    %40 = arith.addf %39, %38 : vector<16x256xf32>
    %41 = arith.mulf %30, %40 : vector<16x256xf32>
    %cst_20 = arith.constant 0.127414793 : f32
    %42 = vector.broadcast %cst_20 : f32 to vector<16x256xf32>
    %43 = arith.addf %42, %41 : vector<16x256xf32>
    %44 = arith.mulf %30, %43 : vector<16x256xf32>
    %45 = arith.mulf %24, %24 : vector<16x256xf32>
    %cst_21 = arith.constant 0.000000e+00 : f32
    %46 = vector.broadcast %cst_21 : f32 to vector<16x256xf32>
    %47 = arith.subf %46, %45 : vector<16x256xf32>
    %48 = math.exp %47 : vector<16x256xf32>
    %49 = arith.mulf %44, %48 : vector<16x256xf32>
    %cst_22 = arith.constant 0.000000e+00 : f32
    %50 = vector.broadcast %cst_22 : f32 to vector<16x256xf32>
    %51 = arith.cmpf olt, %21, %50 : vector<16x256xf32>
    %cst_23 = arith.constant 1.000000e+00 : f32
    %52 = vector.broadcast %cst_23 : f32 to vector<16x256xf32>
    %53 = arith.subf %52, %49 : vector<16x256xf32>
    %54 = arith.select %51, %49, %53 : vector<16x256xi1>, vector<16x256xf32>
    %55 = arith.mulf %21, %54 : vector<16x256xf32>
    %c0_24 = arith.constant 0 : index
    %c0_25 = arith.constant 0 : index
    %c0_26 = arith.constant 0 : index
    %56 = vector.load %arg5[%c0_24, %c0_25, %c0_26] : memref<1x16x256xf32, #tpu.memory_space<vmem>>, vector<1x16x256xf32>
    %57 = vector.shape_cast %56 : vector<1x16x256xf32> to vector<16x256xf32>
    %58 = vector.shape_cast %55 : vector<16x256xf32> to vector<1x16x256xf32>
    tpu.vector_store %arg5[%c0_24, %c0_25, %c0_26], %58 {strides = array<i32>} : memref<1x16x256xf32, #tpu.memory_space<vmem>>, vector<1x16x256xf32>,
    return
  }
  func.func @transform_0(%arg0: i32, %arg1: i32) -> (i32, i32, i32) {
    %c0_i32 = arith.constant 0 : i32
    %c0_i32_0 = arith.constant 0 : i32
    return %arg0, %c0_i32, %arg1 : i32, i32, i32
  }
  func.func @transform_1(%arg0: i32, %arg1: i32) -> (i32, i32) {
    %c0_i32 = arith.constant 0 : i32
    %c0_i32_0 = arith.constant 0 : i32
    %c0_i32_1 = arith.constant 0 : i32
    return %c0_i32, %c0_i32_0 : i32, i32
  }
  func.func @transform_2(%arg0: i32, %arg1: i32) -> (i32, i32) {
    %c0_i32 = arith.constant 0 : i32
    %c0_i32_0 = arith.constant 0 : i32
    %c0_i32_1 = arith.constant 0 : i32
    return %c0_i32, %c0_i32_0 : i32, i32
  }
  func.func @transform_3(%arg0: i32, %arg1: i32) -> (i32, i32, i32) {
    %c0_i32 = arith.constant 0 : i32
    %c0_i32_0 = arith.constant 0 : i32
    return %arg0, %c0_i32, %arg1 : i32, i32, i32
  }
}

</mosaic_0001>

<llo_original>
// kernel: tpu_custom_call.1
$region0: #{tpu_custom_call.1}
  #allocation0 [shape = 'u32[]', space=smem, size = 0x4, offset = 0x4, fixed_abs, tag = 'smem constant byte address 0x4 - core index']
  #allocation1 [shape = 'u32[144,128]{1,0:T(1,128)}', space=vmem, size = 0x12000, scoped, tag = 'internal scratch']
  %s0 = inlined_call_operand.hbm [shape: f32[2,32,256], index: 0, kind: input, shape index: {}]
  %s1 = inlined_call_operand.vmem [shape: f32[16,32], index: 1, kind: input, shape index: {}]
  %s2 = inlined_call_operand.vmem [shape: f32[16,1], index: 2, kind: input, shape index: {}]
  %s3 = inlined_call_operand.hbm [shape: f32[2,16,256], index: 3, kind: output, shape index: {}]
  %s4 = sld [smem:[#allocation0]]
  $region49: #{tpu_custom_call.1} parent=0
    _
  %s6 = ssub.s32 1, %s4
  %s7 = scalar_select 0, %s6, %s4
  $region1: #{tpu_custom_call.1} parent=0
    #allocation2 [shape = 'u8[65536]{0}', space=vmem, size = 0x10000, scoped, tag = 'input window, operand 0']
    #allocation3 [shape = 's32[2]{0}', space=sflag, size = 0x8, scoped, tag = 'scoped memory for tpu_custom_call.1']
    #allocation4 [shape = 's32[2]{0}', space=sflag, size = 0x8, scoped, tag = 'scoped memory for tpu_custom_call.1']
    #allocation5 [shape = 'u8[32768]{0}', space=vmem, size = 0x8000, scoped, tag = 'output window, operand 0']
    %8 = vsyncpa [#allocation3], 0
    %s9 = scalar_lea.sflag [#allocation3], 1
    %10 = vsyncpa %s9, 0
    %11 = vsyncpa [#allocation4], 0
    %s12 = scalar_lea.sflag [#allocation4], 1
    %13 = vsyncpa %s12, 0
    loop: start=0, step=1, limit=4
    $region2: #{tpu_custom_call.1} parent=1 // loop_pre_header
      _
    $region3: #{tpu_custom_call.1} parent=1 // loop_header
      %s15 = sphi 0, %s19
      %p16 = scmp.ge.s32.totalorder %s15, 4
      %s22 = sphi 0, %s34
      %s23 = sphi 0, %s30
      %s24 = sphi 0, %s22
      %s25 = sphi 0, %s23
      %s26 = sphi 0, %s24
      %s27 = sphi 0, %s25
      %s39 = sphi 0, %s41
      %s42 = sphi 0, %s39
      %s43 = sphi 0, %s42
      %s59 = sphi 0, %s43
      %s63 = sphi 0, %s63
      %s65 = sphi 0, %s63
      %s66 = sphi 0, %s65
      %s80 = sphi 0, %s66
      %s84 = sphi 0, %s84
      %s86 = sphi 0, %s84
      %s87 = sphi 0, %s86
      %s101 = sphi 0, %s87
      %s109 = sphi 0, %s111
      %s112 = sphi 0, %s109
      %s113 = sphi 0, %s112
      %s129 = sphi 0, %s113
    $region4: #{tpu_custom_call.1} parent=1 // loop_header_branch
      %18 = sbr.rel (%p16) target = $region8
    $region5: #{tpu_custom_call.1} parent=1 // loop_body
      %s20 = ssub.s32 %s15, 1
      %s21 = ssub.s32 %s15, 2
      %s28 = sadd.s32 1, %s23
      %p29 = scmp.ge.s32.totalorder %s28, 1
      %s30 = scalar_select %p29, 0, %s28
      %s31 = sadd.s32 1, %s22
      %s32 = scalar_select %p29, %s31, %s22
      %p33 = scmp.ge.s32.totalorder %s32, 2
      %s34 = scalar_select %p33, 0, %s32
      %s35 = ssub.s32 %s22, %s34
      %s36 = ssub.s32 %s23, %s30
      %s37 = sor.u32 %s35, %s36
      %p38 = scmp.eq.s32.totalorder %s37, 0
      %s40 = sadd.s32 %s39, 1
      %s41 = scalar_select %p38, %s39, %s40
      %p44 = pneg %p38
      %p45 = scmp.eq.s32.totalorder %s15, 1
      %p46 = por %p44, %p45
      %p47 = scmp.ne.s32.totalorder %s39, %s42
      %p48 = scmp.eq.s32.totalorder %s15, 0
      %p49 = por %p47, %p48
      %p50 = scmp.ne.s32.totalorder %s39, %s42
      %p51 = scmp.eq.s32.totalorder %s20, 1
      %p52 = por %p50, %p51
      %p53 = scmp.ne.s32.totalorder %s42, %s43
      %p54 = scmp.eq.s32.totalorder %s20, 0
      %p55 = por %p53, %p54
      %p56 = scmp.ne.s32.totalorder %s42, %s43
      %p57 = scmp.eq.s32.totalorder %s21, 1
      %p58 = por %p56, %p57
      %p60 = scmp.ne.s32.totalorder %s43, %s59
      %p61 = scmp.eq.s32.totalorder %s21, 0
      %p62 = por %p60, %p61
      %s64 = sadd.s32 %s63, 1
      %p67 = scmp.eq.s32.totalorder %s15, 1
      %p68 = scmp.ne.s32.totalorder %s63, %s65
      %p69 = scmp.eq.s32.totalorder %s15, 0
      %p70 = por %p68, %p69
      %p71 = scmp.ne.s32.totalorder %s63, %s65
      %p72 = scmp.eq.s32.totalorder %s20, 1
      %p73 = por %p71, %p72
      %p74 = scmp.ne.s32.totalorder %s65, %s66
      %p75 = scmp.eq.s32.totalorder %s20, 0
      %p76 = por %p74, %p75
      %p77 = scmp.ne.s32.totalorder %s65, %s66
      %p78 = scmp.eq.s32.totalorder %s21, 1
      %p79 = por %p77, %p78
      %p81 = scmp.ne.s32.totalorder %s66, %s80
      %p82 = scmp.eq.s32.totalorder %s21, 0
      %p83 = por %p81, %p82
      %s85 = sadd.s32 %s84, 1
      %p88 = scmp.eq.s32.totalorder %s15, 1
      %p89 = scmp.ne.s32.totalorder %s84, %s86
      %p90 = scmp.eq.s32.totalorder %s15, 0
      %p91 = por %p89, %p90
      %p92 = scmp.ne.s32.totalorder %s84, %s86
      %p93 = scmp.eq.s32.totalorder %s20, 1
      %p94 = por %p92, %p93
      %p95 = scmp.ne.s32.totalorder %s86, %s87
      %p96 = scmp.eq.s32.totalorder %s20, 0
      %p97 = por %p95, %p96
      %p98 = scmp.ne.s32.totalorder %s86, %s87
      %p99 = scmp.eq.s32.totalorder %s21, 1
      %p100 = por %p98, %p99
      %p102 = scmp.ne.s32.totalorder %s87, %s101
      %p103 = scmp.eq.s32.totalorder %s21, 0
      %p104 = por %p102, %p103
      %s105 = ssub.s32 %s22, %s34
      %s106 = ssub.s32 %s23, %s30
      %s107 = sor.u32 %s105, %s106
      %p108 = scmp.eq.s32.totalorder %s107, 0
      %s110 = sadd.s32 %s109, 1
      %s111 = scalar_select %p108, %s109, %s110
      %p114 = pneg %p108
      %p115 = scmp.eq.s32.totalorder %s15, 1
      %p116 = por %p114, %p115
      %p117 = scmp.ne.s32.totalorder %s109, %s112
      %p118 = scmp.eq.s32.totalorder %s15, 0
      %p119 = por %p117, %p118
      %p120 = scmp.ne.s32.totalorder %s109, %s112
      %p121 = scmp.eq.s32.totalorder %s20, 1
      %p122 = por %p120, %p121
      %p123 = scmp.ne.s32.totalorder %s112, %s113
      %p124 = scmp.eq.s32.totalorder %s20, 0
      %p125 = por %p123, %p124
      %p126 = scmp.ne.s32.totalorder %s112, %s113
      %p127 = scmp.eq.s32.totalorder %s21, 1
      %p128 = por %p126, %p127
      %p130 = scmp.ne.s32.totalorder %s113, %s129
      %p131 = scmp.eq.s32.totalorder %s21, 0
      %p132 = por %p130, %p131
      %p133 = scmp.le.s32.totalorder 1, %s15
      %p134 = scmp.lt.s32.totalorder %s15, 3
      %p135 = pnand %p133, %p134
      %p136 = pneg %p135
      // Predicated region
      $region9: #{tpu_custom_call.1} parent=5 // pred_check
        _
      $region10: #{tpu_custom_call.1} parent=5 // pred_check_branch
        %138 = sbr.rel (%p135) target = $region12
      $region11: #{tpu_custom_call.1} parent=5 // pred_region
        %s139 = ssub.s32 %s15, 1
        // Predicated region
        $region13: #{tpu_custom_call.1} parent=11 // pred_check
          %p140 = pneg %p76
        $region14: #{tpu_custom_call.1} parent=11 // pred_check_branch
          %142 = sbr.rel (%p140) target = $region16
        $region15: #{tpu_custom_call.1} parent=11 // pred_region
          _
        $region16: #{tpu_custom_call.1} parent=11 // pred_fallthru
          _
        // Predicated region
        $region17: #{tpu_custom_call.1} parent=11 // pred_check
          %p143 = pneg %p97
        $region18: #{tpu_custom_call.1} parent=11 // pred_check_branch
          %145 = sbr.rel (%p143) target = $region20
        $region19: #{tpu_custom_call.1} parent=11 // pred_region
          _
        $region20: #{tpu_custom_call.1} parent=11 // pred_fallthru
          _
      $region12: #{tpu_custom_call.1} parent=5 // pred_fallthru
        _
      %p146 = scmp.lt.s32.totalorder %s15, 2
      // Predicated region
      $region21: #{tpu_custom_call.1} parent=5 // pred_check
        %p147 = pneg %p146
      $region22: #{tpu_custom_call.1} parent=5 // pred_check_branch
        %149 = sbr.rel (%p147) target = $region24
      $region23: #{tpu_custom_call.1} parent=5 // pred_region
        // Predicated region
        $region25: #{tpu_custom_call.1} parent=23 // pred_check
          %p150 = pneg %p49
        $region26: #{tpu_custom_call.1} parent=23 // pred_check_branch
          %152 = sbr.rel (%p150) target = $region28
        $region27: #{tpu_custom_call.1} parent=23 // pred_region
          %s153 = sand.u32 %s39, 1
          %s154 = scalar_lea.sflag [#allocation3], %s153
          %s155 = sand.u32 %s39, 1
          %s156 = smul.addr %s155, 64
          %s157 = scalar_lea.vmem [#allocation2], %s156
          %s158 = smul.u32 2, %s23
          %s160 = ssub.s32 1024, 1024
          %161 = vsyncadd %s154, %s160
          %s162 = smul.addr %s22, 8
          %s163 = sadd.s32 %s158, %s162
          %s164 = smul.addr %s163, 128
          %s165 = scalar_lea.hbm %s0, %s164
          %s166 = sshll.u32 %s157, 4
          %s167 = int_to_ptr.vmem [resolvable:$true] %s166
          %172 = dma.hbm_to_vmem [thread:$0]  %s165, 1024, %s167, %s154, 256, 256, 16
        $region28: #{tpu_custom_call.1} parent=23 // pred_fallthru
          _
      $region24: #{tpu_custom_call.1} parent=5 // pred_fallthru
        _
      %p173 = scmp.le.s32.totalorder 1, %s15
      %p174 = scmp.lt.s32.totalorder %s15, 3
      %p175 = pnand %p173, %p174
      %p176 = pneg %p175
      // Predicated region
      $region29: #{tpu_custom_call.1} parent=5 // pred_check
        _
      $region30: #{tpu_custom_call.1} parent=5 // pred_check_branch
        %178 = sbr.rel (%p175) target = $region32
      $region31: #{tpu_custom_call.1} parent=5 // pred_region
        %s179 = ssub.s32 %s15, 1
        %s180 = sand.u32 %s42, 1
        %s181 = scalar_lea.sflag [#allocation3], %s180
        %s182 = sand.u32 %s42, 1
        %s183 = smul.addr %s182, 64
        %s184 = scalar_lea.vmem [#allocation2], %s183
        // Predicated region
        $region33: #{tpu_custom_call.1} parent=31 // pred_check
          %p185 = pneg %p55
        $region34: #{tpu_custom_call.1} parent=31 // pred_check_branch
          %187 = sbr.rel (%p185) target = $region36
        $region35: #{tpu_custom_call.1} parent=31 // pred_region
          %188 = dma.done %s181, 1024
        $region36: #{tpu_custom_call.1} parent=31 // pred_fallthru
          _
        %s189 = sand.u32 %s42, 1
        %s190 = scalar_lea.sflag [#allocation3], %s189
        %s191 = sand.u32 %s42, 1
        %s192 = smul.addr %s191, 64
        %s193 = scalar_lea.vmem [#allocation2], %s192
        %p194 = pneg %p55
        %p195 = pneg %p52
        %p196 = pneg %p76
        %p197 = pneg %p73
        %p198 = pneg %p97
        %p199 = pneg %p94
        %p200 = pneg %p125
        %p201 = pneg %p122
        %s202 = sand.u32 %s112, 1
        %s203 = scalar_lea.sflag [#allocation4], %s202
        %s204 = sand.u32 %s112, 1
        %s205 = smul.addr %s204, 32
        %s206 = scalar_lea.vmem [#allocation5], %s205
        %s207 = smul.u32 2, %s25
        %s208 = smul.u32 2, %s25
        %v209 = vld [vmem:[%s184] sm:$0xff]
        %v210 = vld [vmem:[%s184 + $0x8] sm:$0xff]
        %v211 = vld [vmem:[%s184 + $0x10] sm:$0xff]
        %v212 = vld [vmem:[%s184 + $0x18] sm:$0xff]
        %v213 = vld [vmem:[%s184 + $0x20] sm:$0xff]
        %v214 = vld [vmem:[%s184 + $0x28] sm:$0xff]
        %v215 = vld [vmem:[%s184 + $0x30] sm:$0xff]
        %v216 = vld [vmem:[%s184 + $0x38] sm:$0xff]
        %vm217 = vcmask 261120
        %v219 = vsel %vm217, 1.0, 0
        %221 = vmatprep.subr.mxu0 0.0
        %222 = vmatpush1.msra.mxu0 0.0
        %223 = vmatprep.subr.mxu0 0.0
        %224 = vmatpush1.msra.mxu0 0.0
        %225 = vmatprep.subr.mxu0 0.0
        %226 = vmatpush1.msra.mxu0 0.0
        %227 = vmatprep.subr.mxu0 0.0
        %228 = vmatpush1.msra.mxu0 0.0
        %229 = vmatprep.subr.mxu0 0.0
        %230 = vmatpush1.msra.mxu0 0.0
        %231 = vmatprep.subr.mxu0 0.0
        %232 = vmatpush1.msra.mxu0 0.0
        %233 = vmatprep.subr.mxu0 0.0
        %234 = vmatpush1.msra.mxu0 0.0
        %235 = vmatprep.subr.mxu0 0.0
        %236 = vmatpush1.msra.mxu0 0.0
        %237 = vmatprep.subr.mxu0 0.0
        %238 = vmatpush1.msra.mxu0 0.0
        %239 = vmatprep.subr.mxu0 0.0
        %240 = vmatpush1.msra.mxu0 0.0
        %241 = vmatprep.subr.mxu0 0.0
        %242 = vmatpush1.msra.mxu0 0.0
        %243 = vmatprep.subr.mxu0 0.0
        %244 = vmatpush1.msra.mxu0 0.0
        %v245 = vand.u32 %v216, 4294901760
        %246 = vmatprep.subr.mxu0 %v245
        %v247 = vand.u32 %v215, 4294901760
        %248 = vmatpush1.msra.mxu0 %v247
        %v249 = vand.u32 %v214, 4294901760
        %250 = vmatprep.subr.mxu0 %v249
        %v251 = vand.u32 %v213, 4294901760
        %252 = vmatpush1.msra.mxu0 %v251
        %v253 = vand.u32 %v212, 4294901760
        %254 = vmatprep.subr.mxu0 %v253
        %v255 = vand.u32 %v211, 4294901760
        %256 = vmatpush1.msra.mxu0 %v255
        %v257 = vand.u32 %v210, 4294901760
        %258 = vmatprep.subr.mxu0 %v257
        %v259 = vand.u32 %v209, 4294901760
        %260 = vmatpush1.msra.mxu0 %v259
        %261 = vmatprep.subr.mxu0 0.0
        %262 = vmatpush2.msra.mxu0 0.0
        %263 = vmatprep.subr.mxu0 0.0
        %264 = vmatpush2.msra.mxu0 0.0
        %265 = vmatprep.subr.mxu0 0.0
        %266 = vmatpush2.msra.mxu0 0.0
        %267 = vmatprep.subr.mxu0 0.0
        %268 = vmatpush2.msra.mxu0 0.0
        %269 = vmatprep.subr.mxu0 0.0
        %270 = vmatpush2.msra.mxu0 0.0
        %271 = vmatprep.subr.mxu0 0.0
        %272 = vmatpush2.msra.mxu0 0.0
        %273 = vmatprep.subr.mxu0 0.0
        %274 = vmatpush2.msra.mxu0 0.0
        %275 = vmatprep.subr.mxu0 0.0
        %276 = vmatpush2.msra.mxu0 0.0
        %277 = vmatprep.subr.mxu0 0.0
        %278 = vmatpush2.msra.mxu0 0.0
        %279 = vmatprep.subr.mxu0 0.0
        %280 = vmatpush2.msra.mxu0 0.0
        %281 = vmatprep.subr.mxu0 0.0
        %282 = vmatpush2.msra.mxu0 0.0
        %283 = vmatprep.subr.mxu0 0.0
        %284 = vmatpush2.msra.mxu0 0.0
        %285 = vmatprep.subr.mxu0 0.0
        %286 = vmatpush2.msra.mxu0 0.0
        %287 = vmatprep.subr.mxu0 0.0
        %288 = vmatpush2.msra.mxu0 0.0
        %289 = vmatprep.subr.mxu0 0.0
        %290 = vmatpush2.msra.mxu0 0.0
        %291 = vmatprep.subr.mxu0 0.0
        %292 = vmatpush2.msra.mxu0 0.0
        %293 = vmatprep.mubr.f32.mxu0 0.0
        %v294 = vand.u32 %v219, 4294901760
        %v295 = vsub.f32 %v219, %v294
        %v296 = vand.u32 %v295, 4294901760
        %v297 = vsub.f32 %v295, %v296
        %v298 = vand.u32 %v297, 4294901760
        %299 = vmatmul.mubr.f32.gmra.mxu0 %v298
        %v300 = vpop.f32.mrf.mxu0
        %v301 = vadd.f32 0.0, %v300
        %v302 = vpop.f32.mrf.mxu0
        %v303 = vadd.f32 0.0, %v302
        %304 = vdwg.mxu0
        %305 = vmatprep.subr.mxu0 0.0
        %306 = vmatpush1.msra.mxu0 0.0
        %307 = vmatprep.subr.mxu0 0.0
        %308 = vmatpush1.msra.mxu0 0.0
        %309 = vmatprep.subr.mxu0 0.0
        %310 = vmatpush1.msra.mxu0 0.0
        %311 = vmatprep.subr.mxu0 0.0
        %312 = vmatpush1.msra.mxu0 0.0
        %313 = vmatprep.subr.mxu0 0.0
        %314 = vmatpush1.msra.mxu0 0.0
        %315 = vmatprep.subr.mxu0 0.0
        %316 = vmatpush1.msra.mxu0 0.0
        %317 = vmatprep.subr.mxu0 0.0
        %318 = vmatpush1.msra.mxu0 0.0
        %319 = vmatprep.subr.mxu0 0.0
        %320 = vmatpush1.msra.mxu0 0.0
        %321 = vmatprep.subr.mxu0 0.0
        %322 = vmatpush1.msra.mxu0 0.0
        %323 = vmatprep.subr.mxu0 0.0
        %324 = vmatpush1.msra.mxu0 0.0
        %325 = vmatprep.subr.mxu0 0.0
        %326 = vmatpush1.msra.mxu0 0.0
        %327 = vmatprep.subr.mxu0 0.0
        %328 = vmatpush1.msra.mxu0 0.0
        %v329 = vand.u32 %v216, 4294901760
        %v330 = vsub.f32 %v216, %v329
        %v331 = vand.u32 %v330, 4294901760
        %v332 = vsub.f32 %v330, %v331
        %v333 = vand.u32 %v332, 4294901760
        %334 = vmatprep.subr.mxu0 %v333
        %v335 = vand.u32 %v215, 4294901760
        %v336 = vsub.f32 %v215, %v335
        %v337 = vand.u32 %v336, 4294901760
        %v338 = vsub.f32 %v336, %v337
        %v339 = vand.u32 %v338, 4294901760
        %340 = vmatpush1.msra.mxu0 %v339
        %v341 = vand.u32 %v214, 4294901760
        %v342 = vsub.f32 %v214, %v341
        %v343 = vand.u32 %v342, 4294901760
        %v344 = vsub.f32 %v342, %v343
        %v345 = vand.u32 %v344, 4294901760
        %346 = vmatprep.subr.mxu0 %v345
        %v347 = vand.u32 %v213, 4294901760
        %v348 = vsub.f32 %v213, %v347
        %v349 = vand.u32 %v348, 4294901760
        %v350 = vsub.f32 %v348, %v349
        %v351 = vand.u32 %v350, 4294901760
        %352 = vmatpush1.msra.mxu0 %v351
        %v353 = vand.u32 %v212, 4294901760
        %v354 = vsub.f32 %v212, %v353
        %v355 = vand.u32 %v354, 4294901760
        %v356 = vsub.f32 %v354, %v355
        %v357 = vand.u32 %v356, 4294901760
        %358 = vmatprep.subr.mxu0 %v357
        %v359 = vand.u32 %v211, 4294901760
        %v360 = vsub.f32 %v211, %v359
        %v361 = vand.u32 %v360, 4294901760
        %v362 = vsub.f32 %v360, %v361
        %v363 = vand.u32 %v362, 4294901760
        %364 = vmatpush1.msra.mxu0 %v363
        %v365 = vand.u32 %v210, 4294901760
        %v366 = vsub.f32 %v210, %v365
        %v367 = vand.u32 %v366, 4294901760
        %v368 = vsub.f32 %v366, %v367
        %v369 = vand.u32 %v368, 4294901760
        %370 = vmatprep.subr.mxu0 %v369
        %v371 = vand.u32 %v209, 4294901760
        %v372 = vsub.f32 %v209, %v371
        %v373 = vand.u32 %v372, 4294901760
        %v374 = vsub.f32 %v372, %v373
        %v375 = vand.u32 %v374, 4294901760
        %376 = vmatpush1.msra.mxu0 %v375
        %377 = vmatprep.subr.mxu0 0.0
        %378 = vmatpush2.msra.mxu0 0.0
        %379 = vmatprep.subr.mxu0 0.0
        %380 = vmatpush2.msra.mxu0 0.0
        %381 = vmatprep.subr.mxu0 0.0
        %382 = vmatpush2.msra.mxu0 0.0
        %383 = vmatprep.subr.mxu0 0.0
        %384 = vmatpush2.msra.mxu0 0.0
        %385 = vmatprep.subr.mxu0 0.0
        %386 = vmatpush2.msra.mxu0 0.0
        %387 = vmatprep.subr.mxu0 0.0
        %388 = vmatpush2.msra.mxu0 0.0
        %389 = vmatprep.subr.mxu0 0.0
        %390 = vmatpush2.msra.mxu0 0.0
        %391 = vmatprep.subr.mxu0 0.0
        %392 = vmatpush2.msra.mxu0 0.0
        %393 = vmatprep.subr.mxu0 0.0
        %394 = vmatpush2.msra.mxu0 0.0
        %395 = vmatprep.subr.mxu0 0.0
        %396 = vmatpush2.msra.mxu0 0.0
        %397 = vmatprep.subr.mxu0 0.0
        %398 = vmatpush2.msra.mxu0 0.0
        %399 = vmatprep.subr.mxu0 0.0
        %400 = vmatpush2.msra.mxu0 0.0
        %401 = vmatprep.subr.mxu0 0.0
        %402 = vmatpush2.msra.mxu0 0.0
        %403 = vmatprep.subr.mxu0 0.0
        %404 = vmatpush2.msra.mxu0 0.0
        %405 = vmatprep.subr.mxu0 0.0
        %406 = vmatpush2.msra.mxu0 0.0
        %407 = vmatprep.subr.mxu0 0.0
        %408 = vmatpush2.msra.mxu0 0.0
        %409 = vmatprep.mubr.f32.mxu0 0.0
        %v410 = vand.u32 %v219, 4294901760
        %411 = vmatmul.mubr.f32.gmra.mxu0 %v410
        %v412 = vpop.f32.mrf.mxu0
        %v413 = vadd.f32 %v301, %v412
        %v414 = vpop.f32.mrf.mxu0
        %v415 = vadd.f32 %v303, %v414
        %416 = vdwg.mxu0
        %417 = vmatprep.subr.mxu0 0.0
        %418 = vmatpush1.msra.mxu0 0.0
        %419 = vmatprep.subr.mxu0 0.0
        %420 = vmatpush1.msra.mxu0 0.0
        %421 = vmatprep.subr.mxu0 0.0
        %422 = vmatpush1.msra.mxu0 0.0
        %423 = vmatprep.subr.mxu0 0.0
        %424 = vmatpush1.msra.mxu0 0.0
        %425 = vmatprep.subr.mxu0 0.0
        %426 = vmatpush1.msra.mxu0 0.0
        %427 = vmatprep.subr.mxu0 0.0
        %428 = vmatpush1.msra.mxu0 0.0
        %429 = vmatprep.subr.mxu0 0.0
        %430 = vmatpush1.msra.mxu0 0.0
        %431 = vmatprep.subr.mxu0 0.0
        %432 = vmatpush1.msra.mxu0 0.0
        %433 = vmatprep.subr.mxu0 0.0
        %434 = vmatpush1.msra.mxu0 0.0
        %435 = vmatprep.subr.mxu0 0.0
        %436 = vmatpush1.msra.mxu0 0.0
        %437 = vmatprep.subr.mxu0 0.0
        %438 = vmatpush1.msra.mxu0 0.0
        %439 = vmatprep.subr.mxu0 0.0
        %440 = vmatpush1.msra.mxu0 0.0
        %v441 = vand.u32 %v216, 4294901760
        %v442 = vsub.f32 %v216, %v441
        %443 = vmatprep.subr.mxu0 %v442
        %v444 = vand.u32 %v215, 4294901760
        %v445 = vsub.f32 %v215, %v444
        %446 = vmatpush1.msra.mxu0 %v445
        %v447 = vand.u32 %v214, 4294901760
        %v448 = vsub.f32 %v214, %v447
        %449 = vmatprep.subr.mxu0 %v448
        %v450 = vand.u32 %v213, 4294901760
        %v451 = vsub.f32 %v213, %v450
        %452 = vmatpush1.msra.mxu0 %v451
        %v453 = vand.u32 %v212, 4294901760
        %v454 = vsub.f32 %v212, %v453
        %455 = vmatprep.subr.mxu0 %v454
        %v456 = vand.u32 %v211, 4294901760
        %v457 = vsub.f32 %v211, %v456
        %458 = vmatpush1.msra.mxu0 %v457
        %v459 = vand.u32 %v210, 4294901760
        %v460 = vsub.f32 %v210, %v459
        %461 = vmatprep.subr.mxu0 %v460
        %v462 = vand.u32 %v209, 4294901760
        %v463 = vsub.f32 %v209, %v462
        %464 = vmatpush1.msra.mxu0 %v463
        %465 = vmatprep.subr.mxu0 0.0
        %466 = vmatpush2.msra.mxu0 0.0
        %467 = vmatprep.subr.mxu0 0.0
        %468 = vmatpush2.msra.mxu0 0.0
        %469 = vmatprep.subr.mxu0 0.0
        %470 = vmatpush2.msra.mxu0 0.0
        %471 = vmatprep.subr.mxu0 0.0
        %472 = vmatpush2.msra.mxu0 0.0
        %473 = vmatprep.subr.mxu0 0.0
        %474 = vmatpush2.msra.mxu0 0.0
        %475 = vmatprep.subr.mxu0 0.0
        %476 = vmatpush2.msra.mxu0 0.0
        %477 = vmatprep.subr.mxu0 0.0
        %478 = vmatpush2.msra.mxu0 0.0
        %479 = vmatprep.subr.mxu0 0.0
        %480 = vmatpush2.msra.mxu0 0.0
        %481 = vmatprep.subr.mxu0 0.0
        %482 = vmatpush2.msra.mxu0 0.0
        %483 = vmatprep.subr.mxu0 0.0
        %484 = vmatpush2.msra.mxu0 0.0
        %485 = vmatprep.subr.mxu0 0.0
        %486 = vmatpush2.msra.mxu0 0.0
        %487 = vmatprep.subr.mxu0 0.0
        %488 = vmatpush2.msra.mxu0 0.0
        %489 = vmatprep.subr.mxu0 0.0
        %490 = vmatpush2.msra.mxu0 0.0
        %491 = vmatprep.subr.mxu0 0.0
        %492 = vmatpush2.msra.mxu0 0.0
        %493 = vmatprep.subr.mxu0 0.0
        %494 = vmatpush2.msra.mxu0 0.0
        %495 = vmatprep.subr.mxu0 0.0
        %496 = vmatpush2.msra.mxu0 0.0
        %497 = vmatprep.mubr.f32.mxu0 0.0
        %v498 = vand.u32 %v219, 4294901760
        %v499 = vsub.f32 %v219, %v498
        %500 = vmatmul.mubr.f32.gmra.mxu0 %v499
        %v501 = vpop.f32.mrf.mxu0
        %v502 = vadd.f32 %v413, %v501
        %v503 = vpop.f32.mrf.mxu0
        %v504 = vadd.f32 %v415, %v503
        %505 = vdwg.mxu0
        %506 = vmatprep.subr.mxu0 0.0
        %507 = vmatpush1.msra.mxu0 0.0
        %508 = vmatprep.subr.mxu0 0.0
        %509 = vmatpush1.msra.mxu0 0.0
        %510 = vmatprep.subr.mxu0 0.0
        %511 = vmatpush1.msra.mxu0 0.0
        %512 = vmatprep.subr.mxu0 0.0
        %513 = vmatpush1.msra.mxu0 0.0
        %514 = vmatprep.subr.mxu0 0.0
        %515 = vmatpush1.msra.mxu0 0.0
        %516 = vmatprep.subr.mxu0 0.0
        %517 = vmatpush1.msra.mxu0 0.0
        %518 = vmatprep.subr.mxu0 0.0
        %519 = vmatpush1.msra.mxu0 0.0
        %520 = vmatprep.subr.mxu0 0.0
        %521 = vmatpush1.msra.mxu0 0.0
        %522 = vmatprep.subr.mxu0 0.0
        %523 = vmatpush1.msra.mxu0 0.0
        %524 = vmatprep.subr.mxu0 0.0
        %525 = vmatpush1.msra.mxu0 0.0
        %526 = vmatprep.subr.mxu0 0.0
        %527 = vmatpush1.msra.mxu0 0.0
        %528 = vmatprep.subr.mxu0 0.0
        %529 = vmatpush1.msra.mxu0 0.0
        %v530 = vand.u32 %v216, 4294901760
        %531 = vmatprep.subr.mxu0 %v530
        %v532 = vand.u32 %v215, 4294901760
        %533 = vmatpush1.msra.mxu0 %v532
        %v534 = vand.u32 %v214, 4294901760
        %535 = vmatprep.subr.mxu0 %v534
        %v536 = vand.u32 %v213, 4294901760
        %537 = vmatpush1.msra.mxu0 %v536
        %v538 = vand.u32 %v212, 4294901760
        %539 = vmatprep.subr.mxu0 %v538
        %v540 = vand.u32 %v211, 4294901760
        %541 = vmatpush1.msra.mxu0 %v540
        %v542 = vand.u32 %v210, 4294901760
        %543 = vmatprep.subr.mxu0 %v542
        %v544 = vand.u32 %v209, 4294901760
        %545 = vmatpush1.msra.mxu0 %v544
        %546 = vmatprep.subr.mxu0 0.0
        %547 = vmatpush2.msra.mxu0 0.0
        %548 = vmatprep.subr.mxu0 0.0
        %549 = vmatpush2.msra.mxu0 0.0
        %550 = vmatprep.subr.mxu0 0.0
        %551 = vmatpush2.msra.mxu0 0.0
        %552 = vmatprep.subr.mxu0 0.0
        %553 = vmatpush2.msra.mxu0 0.0
        %554 = vmatprep.subr.mxu0 0.0
        %555 = vmatpush2.msra.mxu0 0.0
        %556 = vmatprep.subr.mxu0 0.0
        %557 = vmatpush2.msra.mxu0 0.0
        %558 = vmatprep.subr.mxu0 0.0
        %559 = vmatpush2.msra.mxu0 0.0
        %560 = vmatprep.subr.mxu0 0.0
        %561 = vmatpush2.msra.mxu0 0.0
        %562 = vmatprep.subr.mxu0 0.0
        %563 = vmatpush2.msra.mxu0 0.0
        %564 = vmatprep.subr.mxu0 0.0
        %565 = vmatpush2.msra.mxu0 0.0
        %566 = vmatprep.subr.mxu0 0.0
        %567 = vmatpush2.msra.mxu0 0.0
        %568 = vmatprep.subr.mxu0 0.0
        %569 = vmatpush2.msra.mxu0 0.0
        %570 = vmatprep.subr.mxu0 0.0
        %571 = vmatpush2.msra.mxu0 0.0
        %572 = vmatprep.subr.mxu0 0.0
        %573 = vmatpush2.msra.mxu0 0.0
        %574 = vmatprep.subr.mxu0 0.0
        %575 = vmatpush2.msra.mxu0 0.0
        %576 = vmatprep.subr.mxu0 0.0
        %577 = vmatpush2.msra.mxu0 0.0
        %578 = vmatprep.mubr.f32.mxu0 0.0
        %v579 = vand.u32 %v219, 4294901760
        %v580 = vsub.f32 %v219, %v579
        %v581 = vand.u32 %v580, 4294901760
        %582 = vmatmul.mubr.f32.gmra.mxu0 %v581
        %v583 = vpop.f32.mrf.mxu0
        %v584 = vadd.f32 %v502, %v583
        %v585 = vpop.f32.mrf.mxu0
        %v586 = vadd.f32 %v504, %v585
        %587 = vdwg.mxu0
        %588 = vmatprep.subr.mxu0 0.0
        %589 = vmatpush1.msra.mxu0 0.0
        %590 = vmatprep.subr.mxu0 0.0
        %591 = vmatpush1.msra.mxu0 0.0
        %592 = vmatprep.subr.mxu0 0.0
        %593 = vmatpush1.msra.mxu0 0.0
        %594 = vmatprep.subr.mxu0 0.0
        %595 = vmatpush1.msra.mxu0 0.0
        %596 = vmatprep.subr.mxu0 0.0
        %597 = vmatpush1.msra.mxu0 0.0
        %598 = vmatprep.subr.mxu0 0.0
        %599 = vmatpush1.msra.mxu0 0.0
        %600 = vmatprep.subr.mxu0 0.0
        %601 = vmatpush1.msra.mxu0 0.0
        %602 = vmatprep.subr.mxu0 0.0
        %603 = vmatpush1.msra.mxu0 0.0
        %604 = vmatprep.subr.mxu0 0.0
        %605 = vmatpush1.msra.mxu0 0.0
        %606 = vmatprep.subr.mxu0 0.0
        %607 = vmatpush1.msra.mxu0 0.0
        %608 = vmatprep.subr.mxu0 0.0
        %609 = vmatpush1.msra.mxu0 0.0
        %610 = vmatprep.subr.mxu0 0.0
        %611 = vmatpush1.msra.mxu0 0.0
        %v612 = vand.u32 %v216, 4294901760
        %v613 = vsub.f32 %v216, %v612
        %v614 = vand.u32 %v613, 4294901760
        %615 = vmatprep.subr.mxu0 %v614
        %v616 = vand.u32 %v215, 4294901760
        %v617 = vsub.f32 %v215, %v616
        %v618 = vand.u32 %v617, 4294901760
        %619 = vmatpush1.msra.mxu0 %v618
        %v620 = vand.u32 %v214, 4294901760
        %v621 = vsub.f32 %v214, %v620
        %v622 = vand.u32 %v621, 4294901760
        %623 = vmatprep.subr.mxu0 %v622
        %v624 = vand.u32 %v213, 4294901760
        %v625 = vsub.f32 %v213, %v624
        %v626 = vand.u32 %v625, 4294901760
        %627 = vmatpush1.msra.mxu0 %v626
        %v628 = vand.u32 %v212, 4294901760
        %v629 = vsub.f32 %v212, %v628
        %v630 = vand.u32 %v629, 4294901760
        %631 = vmatprep.subr.mxu0 %v630
        %v632 = vand.u32 %v211, 4294901760
        %v633 = vsub.f32 %v211, %v632
        %v634 = vand.u32 %v633, 4294901760
        %635 = vmatpush1.msra.mxu0 %v634
        %v636 = vand.u32 %v210, 4294901760
        %v637 = vsub.f32 %v210, %v636
        %v638 = vand.u32 %v637, 4294901760
        %639 = vmatprep.subr.mxu0 %v638
        %v640 = vand.u32 %v209, 4294901760
        %v641 = vsub.f32 %v209, %v640
        %v642 = vand.u32 %v641, 4294901760
        %643 = vmatpush1.msra.mxu0 %v642
        %644 = vmatprep.subr.mxu0 0.0
        %645 = vmatpush2.msra.mxu0 0.0
        %646 = vmatprep.subr.mxu0 0.0
        %647 = vmatpush2.msra.mxu0 0.0
        %648 = vmatprep.subr.mxu0 0.0
        %649 = vmatpush2.msra.mxu0 0.0
        %650 = vmatprep.subr.mxu0 0.0
        %651 = vmatpush2.msra.mxu0 0.0
        %652 = vmatprep.subr.mxu0 0.0
        %653 = vmatpush2.msra.mxu0 0.0
        %654 = vmatprep.subr.mxu0 0.0
        %655 = vmatpush2.msra.mxu0 0.0
        %656 = vmatprep.subr.mxu0 0.0
        %657 = vmatpush2.msra.mxu0 0.0
        %658 = vmatprep.subr.mxu0 0.0
        %659 = vmatpush2.msra.mxu0 0.0
        %660 = vmatprep.subr.mxu0 0.0
        %661 = vmatpush2.msra.mxu0 0.0
        %662 = vmatprep.subr.mxu0 0.0
        %663 = vmatpush2.msra.mxu0 0.0
        %664 = vmatprep.subr.mxu0 0.0
        %665 = vmatpush2.msra.mxu0 0.0
        %666 = vmatprep.subr.mxu0 0.0
        %667 = vmatpush2.msra.mxu0 0.0
        %668 = vmatprep.subr.mxu0 0.0
        %669 = vmatpush2.msra.mxu0 0.0
        %670 = vmatprep.subr.mxu0 0.0
        %671 = vmatpush2.msra.mxu0 0.0
        %672 = vmatprep.subr.mxu0 0.0
        %673 = vmatpush2.msra.mxu0 0.0
        %674 = vmatprep.subr.mxu0 0.0
        %675 = vmatpush2.msra.mxu0 0.0
        %676 = vmatprep.mubr.f32.mxu0 0.0
        %v677 = vand.u32 %v219, 4294901760
        %678 = vmatmul.mubr.f32.gmra.mxu0 %v677
        %v679 = vpop.f32.mrf.mxu0
        %v680 = vadd.f32 %v584, %v679
        %v681 = vpop.f32.mrf.mxu0
        %v682 = vadd.f32 %v586, %v681
        %683 = vdwg.mxu0
        %684 = vmatprep.subr.mxu0 0.0
        %685 = vmatpush1.msra.mxu0 0.0
        %686 = vmatprep.subr.mxu0 0.0
        %687 = vmatpush1.msra.mxu0 0.0
        %688 = vmatprep.subr.mxu0 0.0
        %689 = vmatpush1.msra.mxu0 0.0
        %690 = vmatprep.subr.mxu0 0.0
        %691 = vmatpush1.msra.mxu0 0.0
        %692 = vmatprep.subr.mxu0 0.0
        %693 = vmatpush1.msra.mxu0 0.0
        %694 = vmatprep.subr.mxu0 0.0
        %695 = vmatpush1.msra.mxu0 0.0
        %696 = vmatprep.subr.mxu0 0.0
        %697 = vmatpush1.msra.mxu0 0.0
        %698 = vmatprep.subr.mxu0 0.0
        %699 = vmatpush1.msra.mxu0 0.0
        %700 = vmatprep.subr.mxu0 0.0
        %701 = vmatpush1.msra.mxu0 0.0
        %702 = vmatprep.subr.mxu0 0.0
        %703 = vmatpush1.msra.mxu0 0.0
        %704 = vmatprep.subr.mxu0 0.0
        %705 = vmatpush1.msra.mxu0 0.0
        %706 = vmatprep.subr.mxu0 0.0
        %707 = vmatpush1.msra.mxu0 0.0
        %v708 = vand.u32 %v216, 4294901760
        %709 = vmatprep.subr.mxu0 %v708
        %v710 = vand.u32 %v215, 4294901760
        %711 = vmatpush1.msra.mxu0 %v710
        %v712 = vand.u32 %v214, 4294901760
        %713 = vmatprep.subr.mxu0 %v712
        %v714 = vand.u32 %v213, 4294901760
        %715 = vmatpush1.msra.mxu0 %v714
        %v716 = vand.u32 %v212, 4294901760
        %717 = vmatprep.subr.mxu0 %v716
        %v718 = vand.u32 %v211, 4294901760
        %719 = vmatpush1.msra.mxu0 %v718
        %v720 = vand.u32 %v210, 4294901760
        %721 = vmatprep.subr.mxu0 %v720
        %v722 = vand.u32 %v209, 4294901760
        %723 = vmatpush1.msra.mxu0 %v722
        %724 = vmatprep.subr.mxu0 0.0
        %725 = vmatpush2.msra.mxu0 0.0
        %726 = vmatprep.subr.mxu0 0.0
        %727 = vmatpush2.msra.mxu0 0.0
        %728 = vmatprep.subr.mxu0 0.0
        %729 = vmatpush2.msra.mxu0 0.0
        %730 = vmatprep.subr.mxu0 0.0
        %731 = vmatpush2.msra.mxu0 0.0
        %732 = vmatprep.subr.mxu0 0.0
        %733 = vmatpush2.msra.mxu0 0.0
        %734 = vmatprep.subr.mxu0 0.0
        %735 = vmatpush2.msra.mxu0 0.0
        %736 = vmatprep.subr.mxu0 0.0
        %737 = vmatpush2.msra.mxu0 0.0
        %738 = vmatprep.subr.mxu0 0.0
        %739 = vmatpush2.msra.mxu0 0.0
        %740 = vmatprep.subr.mxu0 0.0
        %741 = vmatpush2.msra.mxu0 0.0
        %742 = vmatprep.subr.mxu0 0.0
        %743 = vmatpush2.msra.mxu0 0.0
        %744 = vmatprep.subr.mxu0 0.0
        %745 = vmatpush2.msra.mxu0 0.0
        %746 = vmatprep.subr.mxu0 0.0
        %747 = vmatpush2.msra.mxu0 0.0
        %748 = vmatprep.subr.mxu0 0.0
        %749 = vmatpush2.msra.mxu0 0.0
        %750 = vmatprep.subr.mxu0 0.0
        %751 = vmatpush2.msra.mxu0 0.0
        %752 = vmatprep.subr.mxu0 0.0
        %753 = vmatpush2.msra.mxu0 0.0
        %754 = vmatprep.subr.mxu0 0.0
        %755 = vmatpush2.msra.mxu0 0.0
        %756 = vmatprep.mubr.f32.mxu0 0.0
        %v757 = vand.u32 %v219, 4294901760
        %758 = vmatmul.mubr.f32.gmra.mxu0 %v757
        %v759 = vpop.f32.mrf.mxu0
        %v760 = vadd.f32 %v680, %v759
        %v761 = vpop.f32.mrf.mxu0
        %v762 = vadd.f32 %v682, %v761
        %763 = vdwg.mxu0
        %v764 = vmul.f32 %v760, 0.03125
        %v765 = vmul.f32 %v762, 0.03125
        %v766 = vlaneseq
        %v767 = vshrl.u32 %v766, 7
        %v768 = vsub.s32 0, %v767
        %v769 = vrot.slane %v764, %v768
        %v770 = vlaneseq
        %v771 = vshrl.u32 %v770, 7
        %v772 = vsub.s32 0, %v771
        %v773 = vrot.slane %v765, %v772
        %v774 = vsub.f32 %v209, %v769
        %v775 = vsub.f32 %v210, %v773
        %v776 = vsub.f32 %v211, %v769
        %v777 = vsub.f32 %v212, %v773
        %v778 = vsub.f32 %v213, %v769
        %v779 = vsub.f32 %v214, %v773
        %v780 = vsub.f32 %v215, %v769
        %v781 = vsub.f32 %v216, %v773
        %v782 = vmul.f32 %v774, %v774
        %v783 = vmul.f32 %v775, %v775
        %v784 = vmul.f32 %v776, %v776
        %v785 = vmul.f32 %v777, %v777
        %v786 = vmul.f32 %v778, %v778
        %v787 = vmul.f32 %v779, %v779
        %v788 = vmul.f32 %v780, %v780
        %v789 = vmul.f32 %v781, %v781
        %790 = vmatprep.subr.mxu0 0.0
        %791 = vmatpush1.msra.mxu0 0.0
        %792 = vmatprep.subr.mxu0 0.0
        %793 = vmatpush1.msra.mxu0 0.0
        %794 = vmatprep.subr.mxu0 0.0
        %795 = vmatpush1.msra.mxu0 0.0
        %796 = vmatprep.subr.mxu0 0.0
        %797 = vmatpush1.msra.mxu0 0.0
        %798 = vmatprep.subr.mxu0 0.0
        %799 = vmatpush1.msra.mxu0 0.0
        %800 = vmatprep.subr.mxu0 0.0
        %801 = vmatpush1.msra.mxu0 0.0
        %802 = vmatprep.subr.mxu0 0.0
        %803 = vmatpush1.msra.mxu0 0.0
        %804 = vmatprep.subr.mxu0 0.0
        %805 = vmatpush1.msra.mxu0 0.0
        %806 = vmatprep.subr.mxu0 0.0
        %807 = vmatpush1.msra.mxu0 0.0
        %808 = vmatprep.subr.mxu0 0.0
        %809 = vmatpush1.msra.mxu0 0.0
        %810 = vmatprep.subr.mxu0 0.0
        %811 = vmatpush1.msra.mxu0 0.0
        %812 = vmatprep.subr.mxu0 0.0
        %813 = vmatpush1.msra.mxu0 0.0
        %v814 = vand.u32 %v789, 4294901760
        %815 = vmatprep.subr.mxu0 %v814
        %v816 = vand.u32 %v788, 4294901760
        %817 = vmatpush1.msra.mxu0 %v816
        %v818 = vand.u32 %v787, 4294901760
        %819 = vmatprep.subr.mxu0 %v818
        %v820 = vand.u32 %v786, 4294901760
        %821 = vmatpush1.msra.mxu0 %v820
        %v822 = vand.u32 %v785, 4294901760
        %823 = vmatprep.subr.mxu0 %v822
        %v824 = vand.u32 %v784, 4294901760
        %825 = vmatpush1.msra.mxu0 %v824
        %v826 = vand.u32 %v783, 4294901760
        %827 = vmatprep.subr.mxu0 %v826
        %v828 = vand.u32 %v782, 4294901760
        %829 = vmatpush1.msra.mxu0 %v828
        %830 = vmatprep.subr.mxu0 0.0
        %831 = vmatpush2.msra.mxu0 0.0
        %832 = vmatprep.subr.mxu0 0.0
        %833 = vmatpush2.msra.mxu0 0.0
        %834 = vmatprep.subr.mxu0 0.0
        %835 = vmatpush2.msra.mxu0 0.0
        %836 = vmatprep.subr.mxu0 0.0
        %837 = vmatpush2.msra.mxu0 0.0
        %838 = vmatprep.subr.mxu0 0.0
        %839 = vmatpush2.msra.mxu0 0.0
        %840 = vmatprep.subr.mxu0 0.0
        %841 = vmatpush2.msra.mxu0 0.0
        %842 = vmatprep.subr.mxu0 0.0
        %843 = vmatpush2.msra.mxu0 0.0
        %844 = vmatprep.subr.mxu0 0.0
        %845 = vmatpush2.msra.mxu0 0.0
        %846 = vmatprep.subr.mxu0 0.0
        %847 = vmatpush2.msra.mxu0 0.0
        %848 = vmatprep.subr.mxu0 0.0
        %849 = vmatpush2.msra.mxu0 0.0
        %850 = vmatprep.subr.mxu0 0.0
        %851 = vmatpush2.msra.mxu0 0.0
        %852 = vmatprep.subr.mxu0 0.0
        %853 = vmatpush2.msra.mxu0 0.0
        %854 = vmatprep.subr.mxu0 0.0
        %855 = vmatpush2.msra.mxu0 0.0
        %856 = vmatprep.subr.mxu0 0.0
        %857 = vmatpush2.msra.mxu0 0.0
        %858 = vmatprep.subr.mxu0 0.0
        %859 = vmatpush2.msra.mxu0 0.0
        %860 = vmatprep.subr.mxu0 0.0
        %861 = vmatpush2.msra.mxu0 0.0
        %862 = vmatprep.mubr.f32.mxu0 0.0
        %v863 = vand.u32 %v219, 4294901760
        %v864 = vsub.f32 %v219, %v863
        %v865 = vand.u32 %v864, 4294901760
        %v866 = vsub.f32 %v864, %v865
        %v867 = vand.u32 %v866, 4294901760
        %868 = vmatmul.mubr.f32.gmra.mxu0 %v867
        %v869 = vpop.f32.mrf.mxu0
        %v870 = vadd.f32 0.0, %v869
        %v871 = vpop.f32.mrf.mxu0
        %v872 = vadd.f32 0.0, %v871
        %873 = vdwg.mxu0
        %874 = vmatprep.subr.mxu0 0.0
        %875 = vmatpush1.msra.mxu0 0.0
        %876 = vmatprep.subr.mxu0 0.0
        %877 = vmatpush1.msra.mxu0 0.0
        %878 = vmatprep.subr.mxu0 0.0
        %879 = vmatpush1.msra.mxu0 0.0
        %880 = vmatprep.subr.mxu0 0.0
        %881 = vmatpush1.msra.mxu0 0.0
        %882 = vmatprep.subr.mxu0 0.0
        %883 = vmatpush1.msra.mxu0 0.0
        %884 = vmatprep.subr.mxu0 0.0
        %885 = vmatpush1.msra.mxu0 0.0
        %886 = vmatprep.subr.mxu0 0.0
        %887 = vmatpush1.msra.mxu0 0.0
        %888 = vmatprep.subr.mxu0 0.0
        %889 = vmatpush1.msra.mxu0 0.0
        %890 = vmatprep.subr.mxu0 0.0
        %891 = vmatpush1.msra.mxu0 0.0
        %892 = vmatprep.subr.mxu0 0.0
        %893 = vmatpush1.msra.mxu0 0.0
        %894 = vmatprep.subr.mxu0 0.0
        %895 = vmatpush1.msra.mxu0 0.0
        %896 = vmatprep.subr.mxu0 0.0
        %897 = vmatpush1.msra.mxu0 0.0
        %v898 = vand.u32 %v789, 4294901760
        %v899 = vsub.f32 %v789, %v898
        %v900 = vand.u32 %v899, 4294901760
        %v901 = vsub.f32 %v899, %v900
        %v902 = vand.u32 %v901, 4294901760
        %903 = vmatprep.subr.mxu0 %v902
        %v904 = vand.u32 %v788, 4294901760
        %v905 = vsub.f32 %v788, %v904
        %v906 = vand.u32 %v905, 4294901760
        %v907 = vsub.f32 %v905, %v906
        %v908 = vand.u32 %v907, 4294901760
        %909 = vmatpush1.msra.mxu0 %v908
        %v910 = vand.u32 %v787, 4294901760
        %v911 = vsub.f32 %v787, %v910
        %v912 = vand.u32 %v911, 4294901760
        %v913 = vsub.f32 %v911, %v912
        %v914 = vand.u32 %v913, 4294901760
        %915 = vmatprep.subr.mxu0 %v914
        %v916 = vand.u32 %v786, 4294901760
        %v917 = vsub.f32 %v786, %v916
        %v918 = vand.u32 %v917, 4294901760
        %v919 = vsub.f32 %v917, %v918
        %v920 = vand.u32 %v919, 4294901760
        %921 = vmatpush1.msra.mxu0 %v920
        %v922 = vand.u32 %v785, 4294901760
        %v923 = vsub.f32 %v785, %v922
        %v924 = vand.u32 %v923, 4294901760
        %v925 = vsub.f32 %v923, %v924
        %v926 = vand.u32 %v925, 4294901760
        %927 = vmatprep.subr.mxu0 %v926
        %v928 = vand.u32 %v784, 4294901760
        %v929 = vsub.f32 %v784, %v928
        %v930 = vand.u32 %v929, 4294901760
        %v931 = vsub.f32 %v929, %v930
        %v932 = vand.u32 %v931, 4294901760
        %933 = vmatpush1.msra.mxu0 %v932
        %v934 = vand.u32 %v783, 4294901760
        %v935 = vsub.f32 %v783, %v934
        %v936 = vand.u32 %v935, 4294901760
        %v937 = vsub.f32 %v935, %v936
        %v938 = vand.u32 %v937, 4294901760
        %939 = vmatprep.subr.mxu0 %v938
        %v940 = vand.u32 %v782, 4294901760
        %v941 = vsub.f32 %v782, %v940
        %v942 = vand.u32 %v941, 4294901760
        %v943 = vsub.f32 %v941, %v942
        %v944 = vand.u32 %v943, 4294901760
        %945 = vmatpush1.msra.mxu0 %v944
        %946 = vmatprep.subr.mxu0 0.0
        %947 = vmatpush2.msra.mxu0 0.0
        %948 = vmatprep.subr.mxu0 0.0
        %949 = vmatpush2.msra.mxu0 0.0
        %950 = vmatprep.subr.mxu0 0.0
        %951 = vmatpush2.msra.mxu0 0.0
        %952 = vmatprep.subr.mxu0 0.0
        %953 = vmatpush2.msra.mxu0 0.0
        %954 = vmatprep.subr.mxu0 0.0
        %955 = vmatpush2.msra.mxu0 0.0
        %956 = vmatprep.subr.mxu0 0.0
        %957 = vmatpush2.msra.mxu0 0.0
        %958 = vmatprep.subr.mxu0 0.0
        %959 = vmatpush2.msra.mxu0 0.0
        %960 = vmatprep.subr.mxu0 0.0
        %961 = vmatpush2.msra.mxu0 0.0
        %962 = vmatprep.subr.mxu0 0.0
        %963 = vmatpush2.msra.mxu0 0.0
        %964 = vmatprep.subr.mxu0 0.0
        %965 = vmatpush2.msra.mxu0 0.0
        %966 = vmatprep.subr.mxu0 0.0
        %967 = vmatpush2.msra.mxu0 0.0
        %968 = vmatprep.subr.mxu0 0.0
        %969 = vmatpush2.msra.mxu0 0.0
        %970 = vmatprep.subr.mxu0 0.0
        %971 = vmatpush2.msra.mxu0 0.0
        %972 = vmatprep.subr.mxu0 0.0
        %973 = vmatpush2.msra.mxu0 0.0
        %974 = vmatprep.subr.mxu0 0.0
        %975 = vmatpush2.msra.mxu0 0.0
        %976 = vmatprep.subr.mxu0 0.0
        %977 = vmatpush2.msra.mxu0 0.0
        %978 = vmatprep.mubr.f32.mxu0 0.0
        %v979 = vand.u32 %v219, 4294901760
        %980 = vmatmul.mubr.f32.gmra.mxu0 %v979
        %v981 = vpop.f32.mrf.mxu0
        %v982 = vadd.f32 %v870, %v981
        %v983 = vpop.f32.mrf.mxu0
        %v984 = vadd.f32 %v872, %v983
        %985 = vdwg.mxu0
        %986 = vmatprep.subr.mxu0 0.0
        %987 = vmatpush1.msra.mxu0 0.0
        %988 = vmatprep.subr.mxu0 0.0
        %989 = vmatpush1.msra.mxu0 0.0
        %990 = vmatprep.subr.mxu0 0.0
        %991 = vmatpush1.msra.mxu0 0.0
        %992 = vmatprep.subr.mxu0 0.0
        %993 = vmatpush1.msra.mxu0 0.0
        %994 = vmatprep.subr.mxu0 0.0
        %995 = vmatpush1.msra.mxu0 0.0
        %996 = vmatprep.subr.mxu0 0.0
        %997 = vmatpush1.msra.mxu0 0.0
        %998 = vmatprep.subr.mxu0 0.0
        %999 = vmatpush1.msra.mxu0 0.0
        %1000 = vmatprep.subr.mxu0 0.0
        %1001 = vmatpush1.msra.mxu0 0.0
        %1002 = vmatprep.subr.mxu0 0.0
        %1003 = vmatpush1.msra.mxu0 0.0
        %1004 = vmatprep.subr.mxu0 0.0
        %1005 = vmatpush1.msra.mxu0 0.0
        %1006 = vmatprep.subr.mxu0 0.0
        %1007 = vmatpush1.msra.mxu0 0.0
        %1008 = vmatprep.subr.mxu0 0.0
        %1009 = vmatpush1.msra.mxu0 0.0
        %v1010 = vand.u32 %v789, 4294901760
        %v1011 = vsub.f32 %v789, %v1010
        %1012 = vmatprep.subr.mxu0 %v1011
        %v1013 = vand.u32 %v788, 4294901760
        %v1014 = vsub.f32 %v788, %v1013
        %1015 = vmatpush1.msra.mxu0 %v1014
        %v1016 = vand.u32 %v787, 4294901760
        %v1017 = vsub.f32 %v787, %v1016
        %1018 = vmatprep.subr.mxu0 %v1017
        %v1019 = vand.u32 %v786, 4294901760
        %v1020 = vsub.f32 %v786, %v1019
        %1021 = vmatpush1.msra.mxu0 %v1020
        %v1022 = vand.u32 %v785, 4294901760
        %v1023 = vsub.f32 %v785, %v1022
        %1024 = vmatprep.subr.mxu0 %v1023
        %v1025 = vand.u32 %v784, 4294901760
        %v1026 = vsub.f32 %v784, %v1025
        %1027 = vmatpush1.msra.mxu0 %v1026
        %v1028 = vand.u32 %v783, 4294901760
        %v1029 = vsub.f32 %v783, %v1028
        %1030 = vmatprep.subr.mxu0 %v1029
        %v1031 = vand.u32 %v782, 4294901760
        %v1032 = vsub.f32 %v782, %v1031
        %1033 = vmatpush1.msra.mxu0 %v1032
        %1034 = vmatprep.subr.mxu0 0.0
        %1035 = vmatpush2.msra.mxu0 0.0
        %1036 = vmatprep.subr.mxu0 0.0
        %1037 = vmatpush2.msra.mxu0 0.0
        %1038 = vmatprep.subr.mxu0 0.0
        %1039 = vmatpush2.msra.mxu0 0.0
        %1040 = vmatprep.subr.mxu0 0.0
        %1041 = vmatpush2.msra.mxu0 0.0
        %1042 = vmatprep.subr.mxu0 0.0
        %1043 = vmatpush2.msra.mxu0 0.0
        %1044 = vmatprep.subr.mxu0 0.0
        %1045 = vmatpush2.msra.mxu0 0.0
        %1046 = vmatprep.subr.mxu0 0.0
        %1047 = vmatpush2.msra.mxu0 0.0
        %1048 = vmatprep.subr.mxu0 0.0
        %1049 = vmatpush2.msra.mxu0 0.0
        %1050 = vmatprep.subr.mxu0 0.0
        %1051 = vmatpush2.msra.mxu0 0.0
        %1052 = vmatprep.subr.mxu0 0.0
        %1053 = vmatpush2.msra.mxu0 0.0
        %1054 = vmatprep.subr.mxu0 0.0
        %1055 = vmatpush2.msra.mxu0 0.0
        %1056 = vmatprep.subr.mxu0 0.0
        %1057 = vmatpush2.msra.mxu0 0.0
        %1058 = vmatprep.subr.mxu0 0.0
        %1059 = vmatpush2.msra.mxu0 0.0
        %1060 = vmatprep.subr.mxu0 0.0
        %1061 = vmatpush2.msra.mxu0 0.0
        %1062 = vmatprep.subr.mxu0 0.0
        %1063 = vmatpush2.msra.mxu0 0.0
        %1064 = vmatprep.subr.mxu0 0.0
        %1065 = vmatpush2.msra.mxu0 0.0
        %1066 = vmatprep.mubr.f32.mxu0 0.0
        %v1067 = vand.u32 %v219, 4294901760
        %v1068 = vsub.f32 %v219, %v1067
        %1069 = vmatmul.mubr.f32.gmra.mxu0 %v1068
        %v1070 = vpop.f32.mrf.mxu0
        %v1071 = vadd.f32 %v982, %v1070
        %v1072 = vpop.f32.mrf.mxu0
        %v1073 = vadd.f32 %v984, %v1072
        %1074 = vdwg.mxu0
        %1075 = vmatprep.subr.mxu0 0.0
        %1076 = vmatpush1.msra.mxu0 0.0
        %1077 = vmatprep.subr.mxu0 0.0
        %1078 = vmatpush1.msra.mxu0 0.0
        %1079 = vmatprep.subr.mxu0 0.0
        %1080 = vmatpush1.msra.mxu0 0.0
        %1081 = vmatprep.subr.mxu0 0.0
        %1082 = vmatpush1.msra.mxu0 0.0
        %1083 = vmatprep.subr.mxu0 0.0
        %1084 = vmatpush1.msra.mxu0 0.0
        %1085 = vmatprep.subr.mxu0 0.0
        %1086 = vmatpush1.msra.mxu0 0.0
        %1087 = vmatprep.subr.mxu0 0.0
        %1088 = vmatpush1.msra.mxu0 0.0
        %1089 = vmatprep.subr.mxu0 0.0
        %1090 = vmatpush1.msra.mxu0 0.0
        %1091 = vmatprep.subr.mxu0 0.0
        %1092 = vmatpush1.msra.mxu0 0.0
        %1093 = vmatprep.subr.mxu0 0.0
        %1094 = vmatpush1.msra.mxu0 0.0
        %1095 = vmatprep.subr.mxu0 0.0
        %1096 = vmatpush1.msra.mxu0 0.0
        %1097 = vmatprep.subr.mxu0 0.0
        %1098 = vmatpush1.msra.mxu0 0.0
        %v1099 = vand.u32 %v789, 4294901760
        %1100 = vmatprep.subr.mxu0 %v1099
        %v1101 = vand.u32 %v788, 4294901760
        %1102 = vmatpush1.msra.mxu0 %v1101
        %v1103 = vand.u32 %v787, 4294901760
        %1104 = vmatprep.subr.mxu0 %v1103
        %v1105 = vand.u32 %v786, 4294901760
        %1106 = vmatpush1.msra.mxu0 %v1105
        %v1107 = vand.u32 %v785, 4294901760
        %1108 = vmatprep.subr.mxu0 %v1107
        %v1109 = vand.u32 %v784, 4294901760
        %1110 = vmatpush1.msra.mxu0 %v1109
        %v1111 = vand.u32 %v783, 4294901760
        %1112 = vmatprep.subr.mxu0 %v1111
        %v1113 = vand.u32 %v782, 4294901760
        %1114 = vmatpush1.msra.mxu0 %v1113
        %1115 = vmatprep.subr.mxu0 0.0
        %1116 = vmatpush2.msra.mxu0 0.0
        %1117 = vmatprep.subr.mxu0 0.0
        %1118 = vmatpush2.msra.mxu0 0.0
        %1119 = vmatprep.subr.mxu0 0.0
        %1120 = vmatpush2.msra.mxu0 0.0
        %1121 = vmatprep.subr.mxu0 0.0
        %1122 = vmatpush2.msra.mxu0 0.0
        %1123 = vmatprep.subr.mxu0 0.0
        %1124 = vmatpush2.msra.mxu0 0.0
        %1125 = vmatprep.subr.mxu0 0.0
        %1126 = vmatpush2.msra.mxu0 0.0
        %1127 = vmatprep.subr.mxu0 0.0
        %1128 = vmatpush2.msra.mxu0 0.0
        %1129 = vmatprep.subr.mxu0 0.0
        %1130 = vmatpush2.msra.mxu0 0.0
        %1131 = vmatprep.subr.mxu0 0.0
        %1132 = vmatpush2.msra.mxu0 0.0
        %1133 = vmatprep.subr.mxu0 0.0
        %1134 = vmatpush2.msra.mxu0 0.0
        %1135 = vmatprep.subr.mxu0 0.0
        %1136 = vmatpush2.msra.mxu0 0.0
        %1137 = vmatprep.subr.mxu0 0.0
        %1138 = vmatpush2.msra.mxu0 0.0
        %1139 = vmatprep.subr.mxu0 0.0
        %1140 = vmatpush2.msra.mxu0 0.0
        %1141 = vmatprep.subr.mxu0 0.0
        %1142 = vmatpush2.msra.mxu0 0.0
        %1143 = vmatprep.subr.mxu0 0.0
        %1144 = vmatpush2.msra.mxu0 0.0
        %1145 = vmatprep.subr.mxu0 0.0
        %1146 = vmatpush2.msra.mxu0 0.0
        %1147 = vmatprep.mubr.f32.mxu0 0.0
        %v1148 = vand.u32 %v219, 4294901760
        %v1149 = vsub.f32 %v219, %v1148
        %v1150 = vand.u32 %v1149, 4294901760
        %1151 = vmatmul.mubr.f32.gmra.mxu0 %v1150
        %v1152 = vpop.f32.mrf.mxu0
        %v1153 = vadd.f32 %v1071, %v1152
        %v1154 = vpop.f32.mrf.mxu0
        %v1155 = vadd.f32 %v1073, %v1154
        %1156 = vdwg.mxu0
        %1157 = vmatprep.subr.mxu0 0.0
        %1158 = vmatpush1.msra.mxu0 0.0
        %1159 = vmatprep.subr.mxu0 0.0
        %1160 = vmatpush1.msra.mxu0 0.0
        %1161 = vmatprep.subr.mxu0 0.0
        %1162 = vmatpush1.msra.mxu0 0.0
        %1163 = vmatprep.subr.mxu0 0.0
        %1164 = vmatpush1.msra.mxu0 0.0
        %1165 = vmatprep.subr.mxu0 0.0
        %1166 = vmatpush1.msra.mxu0 0.0
        %1167 = vmatprep.subr.mxu0 0.0
        %1168 = vmatpush1.msra.mxu0 0.0
        %1169 = vmatprep.subr.mxu0 0.0
        %1170 = vmatpush1.msra.mxu0 0.0
        %1171 = vmatprep.subr.mxu0 0.0
        %1172 = vmatpush1.msra.mxu0 0.0
        %1173 = vmatprep.subr.mxu0 0.0
        %1174 = vmatpush1.msra.mxu0 0.0
        %1175 = vmatprep.subr.mxu0 0.0
        %1176 = vmatpush1.msra.mxu0 0.0
        %1177 = vmatprep.subr.mxu0 0.0
        %1178 = vmatpush1.msra.mxu0 0.0
        %1179 = vmatprep.subr.mxu0 0.0
        %1180 = vmatpush1.msra.mxu0 0.0
        %v1181 = vand.u32 %v789, 4294901760
        %v1182 = vsub.f32 %v789, %v1181
        %v1183 = vand.u32 %v1182, 4294901760
        %1184 = vmatprep.subr.mxu0 %v1183
        %v1185 = vand.u32 %v788, 4294901760
        %v1186 = vsub.f32 %v788, %v1185
        %v1187 = vand.u32 %v1186, 4294901760
        %1188 = vmatpush1.msra.mxu0 %v1187
        %v1189 = vand.u32 %v787, 4294901760
        %v1190 = vsub.f32 %v787, %v1189
        %v1191 = vand.u32 %v1190, 4294901760
        %1192 = vmatprep.subr.mxu0 %v1191
        %v1193 = vand.u32 %v786, 4294901760
        %v1194 = vsub.f32 %v786, %v1193
        %v1195 = vand.u32 %v1194, 4294901760
        %1196 = vmatpush1.msra.mxu0 %v1195
        %v1197 = vand.u32 %v785, 4294901760
        %v1198 = vsub.f32 %v785, %v1197
        %v1199 = vand.u32 %v1198, 4294901760
        %1200 = vmatprep.subr.mxu0 %v1199
        %v1201 = vand.u32 %v784, 4294901760
        %v1202 = vsub.f32 %v784, %v1201
        %v1203 = vand.u32 %v1202, 4294901760
        %1204 = vmatpush1.msra.mxu0 %v1203
        %v1205 = vand.u32 %v783, 4294901760
        %v1206 = vsub.f32 %v783, %v1205
        %v1207 = vand.u32 %v1206, 4294901760
        %1208 = vmatprep.subr.mxu0 %v1207
        %v1209 = vand.u32 %v782, 4294901760
        %v1210 = vsub.f32 %v782, %v1209
        %v1211 = vand.u32 %v1210, 4294901760
        %1212 = vmatpush1.msra.mxu0 %v1211
        %1213 = vmatprep.subr.mxu0 0.0
        %1214 = vmatpush2.msra.mxu0 0.0
        %1215 = vmatprep.subr.mxu0 0.0
        %1216 = vmatpush2.msra.mxu0 0.0
        %1217 = vmatprep.subr.mxu0 0.0
        %1218 = vmatpush2.msra.mxu0 0.0
        %1219 = vmatprep.subr.mxu0 0.0
        %1220 = vmatpush2.msra.mxu0 0.0
        %1221 = vmatprep.subr.mxu0 0.0
        %1222 = vmatpush2.msra.mxu0 0.0
        %1223 = vmatprep.subr.mxu0 0.0
        %1224 = vmatpush2.msra.mxu0 0.0
        %1225 = vmatprep.subr.mxu0 0.0
        %1226 = vmatpush2.msra.mxu0 0.0
        %1227 = vmatprep.subr.mxu0 0.0
        %1228 = vmatpush2.msra.mxu0 0.0
        %1229 = vmatprep.subr.mxu0 0.0
        %1230 = vmatpush2.msra.mxu0 0.0
        %1231 = vmatprep.subr.mxu0 0.0
        %1232 = vmatpush2.msra.mxu0 0.0
        %1233 = vmatprep.subr.mxu0 0.0
        %1234 = vmatpush2.msra.mxu0 0.0
        %1235 = vmatprep.subr.mxu0 0.0
        %1236 = vmatpush2.msra.mxu0 0.0
        %1237 = vmatprep.subr.mxu0 0.0
        %1238 = vmatpush2.msra.mxu0 0.0
        %1239 = vmatprep.subr.mxu0 0.0
        %1240 = vmatpush2.msra.mxu0 0.0
        %1241 = vmatprep.subr.mxu0 0.0
        %1242 = vmatpush2.msra.mxu0 0.0
        %1243 = vmatprep.subr.mxu0 0.0
        %1244 = vmatpush2.msra.mxu0 0.0
        %1245 = vmatprep.mubr.f32.mxu0 0.0
        %v1246 = vand.u32 %v219, 4294901760
        %1247 = vmatmul.mubr.f32.gmra.mxu0 %v1246
        %v1248 = vpop.f32.mrf.mxu0
        %v1249 = vadd.f32 %v1153, %v1248
        %v1250 = vpop.f32.mrf.mxu0
        %v1251 = vadd.f32 %v1155, %v1250
        %1252 = vdwg.mxu0
        %1253 = vmatprep.subr.mxu0 0.0
        %1254 = vmatpush1.msra.mxu0 0.0
        %1255 = vmatprep.subr.mxu0 0.0
        %1256 = vmatpush1.msra.mxu0 0.0
        %1257 = vmatprep.subr.mxu0 0.0
        %1258 = vmatpush1.msra.mxu0 0.0
        %1259 = vmatprep.subr.mxu0 0.0
        %1260 = vmatpush1.msra.mxu0 0.0
        %1261 = vmatprep.subr.mxu0 0.0
        %1262 = vmatpush1.msra.mxu0 0.0
        %1263 = vmatprep.subr.mxu0 0.0
        %1264 = vmatpush1.msra.mxu0 0.0
        %1265 = vmatprep.subr.mxu0 0.0
        %1266 = vmatpush1.msra.mxu0 0.0
        %1267 = vmatprep.subr.mxu0 0.0
        %1268 = vmatpush1.msra.mxu0 0.0
        %1269 = vmatprep.subr.mxu0 0.0
        %1270 = vmatpush1.msra.mxu0 0.0
        %1271 = vmatprep.subr.mxu0 0.0
        %1272 = vmatpush1.msra.mxu0 0.0
        %1273 = vmatprep.subr.mxu0 0.0
        %1274 = vmatpush1.msra.mxu0 0.0
        %1275 = vmatprep.subr.mxu0 0.0
        %1276 = vmatpush1.msra.mxu0 0.0
        %v1277 = vand.u32 %v789, 4294901760
        %1278 = vmatprep.subr.mxu0 %v1277
        %v1279 = vand.u32 %v788, 4294901760
        %1280 = vmatpush1.msra.mxu0 %v1279
        %v1281 = vand.u32 %v787, 4294901760
        %1282 = vmatprep.subr.mxu0 %v1281
        %v1283 = vand.u32 %v786, 4294901760
        %1284 = vmatpush1.msra.mxu0 %v1283
        %v1285 = vand.u32 %v785, 4294901760
        %1286 = vmatprep.subr.mxu0 %v1285
        %v1287 = vand.u32 %v784, 4294901760
        %1288 = vmatpush1.msra.mxu0 %v1287
        %v1289 = vand.u32 %v783, 4294901760
        %1290 = vmatprep.subr.mxu0 %v1289
        %v1291 = vand.u32 %v782, 4294901760
        %1292 = vmatpush1.msra.mxu0 %v1291
        %1293 = vmatprep.subr.mxu0 0.0
        %1294 = vmatpush2.msra.mxu0 0.0
        %1295 = vmatprep.subr.mxu0 0.0
        %1296 = vmatpush2.msra.mxu0 0.0
        %1297 = vmatprep.subr.mxu0 0.0
        %1298 = vmatpush2.msra.mxu0 0.0
        %1299 = vmatprep.subr.mxu0 0.0
        %1300 = vmatpush2.msra.mxu0 0.0
        %1301 = vmatprep.subr.mxu0 0.0
        %1302 = vmatpush2.msra.mxu0 0.0
        %1303 = vmatprep.subr.mxu0 0.0
        %1304 = vmatpush2.msra.mxu0 0.0
        %1305 = vmatprep.subr.mxu0 0.0
        %1306 = vmatpush2.msra.mxu0 0.0
        %1307 = vmatprep.subr.mxu0 0.0
        %1308 = vmatpush2.msra.mxu0 0.0
        %1309 = vmatprep.subr.mxu0 0.0
        %1310 = vmatpush2.msra.mxu0 0.0
        %1311 = vmatprep.subr.mxu0 0.0
        %1312 = vmatpush2.msra.mxu0 0.0
        %1313 = vmatprep.subr.mxu0 0.0
        %1314 = vmatpush2.msra.mxu0 0.0
        %1315 = vmatprep.subr.mxu0 0.0
        %1316 = vmatpush2.msra.mxu0 0.0
        %1317 = vmatprep.subr.mxu0 0.0
        %1318 = vmatpush2.msra.mxu0 0.0
        %1319 = vmatprep.subr.mxu0 0.0
        %1320 = vmatpush2.msra.mxu0 0.0
        %1321 = vmatprep.subr.mxu0 0.0
        %1322 = vmatpush2.msra.mxu0 0.0
        %1323 = vmatprep.subr.mxu0 0.0
        %1324 = vmatpush2.msra.mxu0 0.0
        %1325 = vmatprep.mubr.f32.mxu0 0.0
        %v1326 = vand.u32 %v219, 4294901760
        %1327 = vmatmul.mubr.f32.gmra.mxu0 %v1326
        %v1328 = vpop.f32.mrf.mxu0
        %v1329 = vadd.f32 %v1249, %v1328
        %v1330 = vpop.f32.mrf.mxu0
        %v1331 = vadd.f32 %v1251, %v1330
        %1332 = vdwg.mxu0
        %v1333 = vmul.f32 %v1329, 0.03125
        %v1334 = vmul.f32 %v1331, 0.03125
        %v1335 = vadd.f32 %v1333, 1e-05
        %v1336 = vadd.f32 %v1334, 1e-05
        %v1337 = vrsqrt.pop %v1335
        %v1338 = vrsqrt.pop %v1336
        %v1339 = vld [vmem:[%s1] sm:$0xff]
        %v1340 = vld [vmem:[%s1 + $0x8] sm:$0xff]
        %v1342 = vsel %vm217, %v1339, 0
        %v1345 = vsel %vm217, %v1340, 0
        %1347 = vmatprep.subr.mxu0 0.0
        %1348 = vmatpush1.msra.mxu0 0.0
        %1349 = vmatprep.subr.mxu0 0.0
        %1350 = vmatpush1.msra.mxu0 0.0
        %1351 = vmatprep.subr.mxu0 0.0
        %1352 = vmatpush1.msra.mxu0 0.0
        %1353 = vmatprep.subr.mxu0 0.0
        %1354 = vmatpush1.msra.mxu0 0.0
        %1355 = vmatprep.subr.mxu0 0.0
        %1356 = vmatpush1.msra.mxu0 0.0
        %1357 = vmatprep.subr.mxu0 0.0
        %1358 = vmatpush1.msra.mxu0 0.0
        %1359 = vmatprep.subr.mxu0 0.0
        %1360 = vmatpush1.msra.mxu0 0.0
        %1361 = vmatprep.subr.mxu0 0.0
        %1362 = vmatpush1.msra.mxu0 0.0
        %1363 = vmatprep.subr.mxu0 0.0
        %1364 = vmatpush1.msra.mxu0 0.0
        %1365 = vmatprep.subr.mxu0 0.0
        %1366 = vmatpush1.msra.mxu0 0.0
        %1367 = vmatprep.subr.mxu0 0.0
        %1368 = vmatpush1.msra.mxu0 0.0
        %1369 = vmatprep.subr.mxu0 0.0
        %1370 = vmatpush1.msra.mxu0 0.0
        %v1371 = vand.u32 %v781, 4294901760
        %1372 = vmatprep.subr.mxu0 %v1371
        %v1373 = vand.u32 %v780, 4294901760
        %1374 = vmatpush1.msra.mxu0 %v1373
        %v1375 = vand.u32 %v779, 4294901760
        %1376 = vmatprep.subr.mxu0 %v1375
        %v1377 = vand.u32 %v778, 4294901760
        %1378 = vmatpush1.msra.mxu0 %v1377
        %v1379 = vand.u32 %v777, 4294901760
        %1380 = vmatprep.subr.mxu0 %v1379
        %v1381 = vand.u32 %v776, 4294901760
        %1382 = vmatpush1.msra.mxu0 %v1381
        %v1383 = vand.u32 %v775, 4294901760
        %1384 = vmatprep.subr.mxu0 %v1383
        %v1385 = vand.u32 %v774, 4294901760
        %1386 = vmatpush1.msra.mxu0 %v1385
        %1387 = vmatprep.subr.mxu0 0.0
        %1388 = vmatpush2.msra.mxu0 0.0
        %1389 = vmatprep.subr.mxu0 0.0
        %1390 = vmatpush2.msra.mxu0 0.0
        %1391 = vmatprep.subr.mxu0 0.0
        %1392 = vmatpush2.msra.mxu0 0.0
        %1393 = vmatprep.subr.mxu0 0.0
        %1394 = vmatpush2.msra.mxu0 0.0
        %1395 = vmatprep.subr.mxu0 0.0
        %1396 = vmatpush2.msra.mxu0 0.0
        %1397 = vmatprep.subr.mxu0 0.0
        %1398 = vmatpush2.msra.mxu0 0.0
        %1399 = vmatprep.subr.mxu0 0.0
        %1400 = vmatpush2.msra.mxu0 0.0
        %1401 = vmatprep.subr.mxu0 0.0
        %1402 = vmatpush2.msra.mxu0 0.0
        %1403 = vmatprep.subr.mxu0 0.0
        %1404 = vmatpush2.msra.mxu0 0.0
        %1405 = vmatprep.subr.mxu0 0.0
        %1406 = vmatpush2.msra.mxu0 0.0
        %1407 = vmatprep.subr.mxu0 0.0
        %1408 = vmatpush2.msra.mxu0 0.0
        %1409 = vmatprep.subr.mxu0 0.0
        %1410 = vmatpush2.msra.mxu0 0.0
        %1411 = vmatprep.subr.mxu0 0.0
        %1412 = vmatpush2.msra.mxu0 0.0
        %1413 = vmatprep.subr.mxu0 0.0
        %1414 = vmatpush2.msra.mxu0 0.0
        %1415 = vmatprep.subr.mxu0 0.0
        %1416 = vmatpush2.msra.mxu0 0.0
        %1417 = vmatprep.subr.mxu0 0.0
        %1418 = vmatpush2.msra.mxu0 0.0
        %1419 = vmatprep.mubr.f32.mxu0 0.0
        %v1420 = vand.u32 %v1342, 4294901760
        %v1421 = vsub.f32 %v1342, %v1420
        %v1422 = vand.u32 %v1421, 4294901760
        %v1423 = vsub.f32 %v1421, %v1422
        %v1424 = vand.u32 %v1423, 4294901760
        %1425 = vmatmul.mubr.f32.gmra.mxu0 %v1424
        %v1426 = vpop.f32.mrf.mxu0
        %v1427 = vadd.f32 0.0, %v1426
        %v1428 = vpop.f32.mrf.mxu0
        %v1429 = vadd.f32 0.0, %v1428
        %1430 = vmatprep.mubr.f32.mxu0 0.0
        %v1431 = vand.u32 %v1345, 4294901760
        %v1432 = vsub.f32 %v1345, %v1431
        %v1433 = vand.u32 %v1432, 4294901760
        %v1434 = vsub.f32 %v1432, %v1433
        %v1435 = vand.u32 %v1434, 4294901760
        %1436 = vmatmul.mubr.f32.gmra.mxu0 %v1435
        %v1437 = vpop.f32.mrf.mxu0
        %v1438 = vadd.f32 0.0, %v1437
        %v1439 = vpop.f32.mrf.mxu0
        %v1440 = vadd.f32 0.0, %v1439
        %1441 = vdwg.mxu0
        %1442 = vmatprep.subr.mxu0 0.0
        %1443 = vmatpush1.msra.mxu0 0.0
        %1444 = vmatprep.subr.mxu0 0.0
        %1445 = vmatpush1.msra.mxu0 0.0
        %1446 = vmatprep.subr.mxu0 0.0
        %1447 = vmatpush1.msra.mxu0 0.0
        %1448 = vmatprep.subr.mxu0 0.0
        %1449 = vmatpush1.msra.mxu0 0.0
        %1450 = vmatprep.subr.mxu0 0.0
        %1451 = vmatpush1.msra.mxu0 0.0
        %1452 = vmatprep.subr.mxu0 0.0
        %1453 = vmatpush1.msra.mxu0 0.0
        %1454 = vmatprep.subr.mxu0 0.0
        %1455 = vmatpush1.msra.mxu0 0.0
        %1456 = vmatprep.subr.mxu0 0.0
        %1457 = vmatpush1.msra.mxu0 0.0
        %1458 = vmatprep.subr.mxu0 0.0
        %1459 = vmatpush1.msra.mxu0 0.0
        %1460 = vmatprep.subr.mxu0 0.0
        %1461 = vmatpush1.msra.mxu0 0.0
        %1462 = vmatprep.subr.mxu0 0.0
        %1463 = vmatpush1.msra.mxu0 0.0
        %1464 = vmatprep.subr.mxu0 0.0
        %1465 = vmatpush1.msra.mxu0 0.0
        %v1466 = vand.u32 %v781, 4294901760
        %v1467 = vsub.f32 %v781, %v1466
        %v1468 = vand.u32 %v1467, 4294901760
        %v1469 = vsub.f32 %v1467, %v1468
        %v1470 = vand.u32 %v1469, 4294901760
        %1471 = vmatprep.subr.mxu0 %v1470
        %v1472 = vand.u32 %v780, 4294901760
        %v1473 = vsub.f32 %v780, %v1472
        %v1474 = vand.u32 %v1473, 4294901760
        %v1475 = vsub.f32 %v1473, %v1474
        %v1476 = vand.u32 %v1475, 4294901760
        %1477 = vmatpush1.msra.mxu0 %v1476
        %v1478 = vand.u32 %v779, 4294901760
        %v1479 = vsub.f32 %v779, %v1478
        %v1480 = vand.u32 %v1479, 4294901760
        %v1481 = vsub.f32 %v1479, %v1480
        %v1482 = vand.u32 %v1481, 4294901760
        %1483 = vmatprep.subr.mxu0 %v1482
        %v1484 = vand.u32 %v778, 4294901760
        %v1485 = vsub.f32 %v778, %v1484
        %v1486 = vand.u32 %v1485, 4294901760
        %v1487 = vsub.f32 %v1485, %v1486
        %v1488 = vand.u32 %v1487, 4294901760
        %1489 = vmatpush1.msra.mxu0 %v1488
        %v1490 = vand.u32 %v777, 4294901760
        %v1491 = vsub.f32 %v777, %v1490
        %v1492 = vand.u32 %v1491, 4294901760
        %v1493 = vsub.f32 %v1491, %v1492
        %v1494 = vand.u32 %v1493, 4294901760
        %1495 = vmatprep.subr.mxu0 %v1494
        %v1496 = vand.u32 %v776, 4294901760
        %v1497 = vsub.f32 %v776, %v1496
        %v1498 = vand.u32 %v1497, 4294901760
        %v1499 = vsub.f32 %v1497, %v1498
        %v1500 = vand.u32 %v1499, 4294901760
        %1501 = vmatpush1.msra.mxu0 %v1500
        %v1502 = vand.u32 %v775, 4294901760
        %v1503 = vsub.f32 %v775, %v1502
        %v1504 = vand.u32 %v1503, 4294901760
        %v1505 = vsub.f32 %v1503, %v1504
        %v1506 = vand.u32 %v1505, 4294901760
        %1507 = vmatprep.subr.mxu0 %v1506
        %v1508 = vand.u32 %v774, 4294901760
        %v1509 = vsub.f32 %v774, %v1508
        %v1510 = vand.u32 %v1509, 4294901760
        %v1511 = vsub.f32 %v1509, %v1510
        %v1512 = vand.u32 %v1511, 4294901760
        %1513 = vmatpush1.msra.mxu0 %v1512
        %1514 = vmatprep.subr.mxu0 0.0
        %1515 = vmatpush2.msra.mxu0 0.0
        %1516 = vmatprep.subr.mxu0 0.0
        %1517 = vmatpush2.msra.mxu0 0.0
        %1518 = vmatprep.subr.mxu0 0.0
        %1519 = vmatpush2.msra.mxu0 0.0
        %1520 = vmatprep.subr.mxu0 0.0
        %1521 = vmatpush2.msra.mxu0 0.0
        %1522 = vmatprep.subr.mxu0 0.0
        %1523 = vmatpush2.msra.mxu0 0.0
        %1524 = vmatprep.subr.mxu0 0.0
        %1525 = vmatpush2.msra.mxu0 0.0
        %1526 = vmatprep.subr.mxu0 0.0
        %1527 = vmatpush2.msra.mxu0 0.0
        %1528 = vmatprep.subr.mxu0 0.0
        %1529 = vmatpush2.msra.mxu0 0.0
        %1530 = vmatprep.subr.mxu0 0.0
        %1531 = vmatpush2.msra.mxu0 0.0
        %1532 = vmatprep.subr.mxu0 0.0
        %1533 = vmatpush2.msra.mxu0 0.0
        %1534 = vmatprep.subr.mxu0 0.0
        %1535 = vmatpush2.msra.mxu0 0.0
        %1536 = vmatprep.subr.mxu0 0.0
        %1537 = vmatpush2.msra.mxu0 0.0
        %1538 = vmatprep.subr.mxu0 0.0
        %1539 = vmatpush2.msra.mxu0 0.0
        %1540 = vmatprep.subr.mxu0 0.0
        %1541 = vmatpush2.msra.mxu0 0.0
        %1542 = vmatprep.subr.mxu0 0.0
        %1543 = vmatpush2.msra.mxu0 0.0
        %1544 = vmatprep.subr.mxu0 0.0
        %1545 = vmatpush2.msra.mxu0 0.0
        %1546 = vmatprep.mubr.f32.mxu0 0.0
        %v1547 = vand.u32 %v1342, 4294901760
        %1548 = vmatmul.mubr.f32.gmra.mxu0 %v1547
        %v1549 = vpop.f32.mrf.mxu0
        %v1550 = vadd.f32 %v1427, %v1549
        %v1551 = vpop.f32.mrf.mxu0
        %v1552 = vadd.f32 %v1429, %v1551
        %1553 = vmatprep.mubr.f32.mxu0 0.0
        %v1554 = vand.u32 %v1345, 4294901760
        %1555 = vmatmul.mubr.f32.gmra.mxu0 %v1554
        %v1556 = vpop.f32.mrf.mxu0
        %v1557 = vadd.f32 %v1438, %v1556
        %v1558 = vpop.f32.mrf.mxu0
        %v1559 = vadd.f32 %v1440, %v1558
        %1560 = vdwg.mxu0
        %1561 = vmatprep.subr.mxu0 0.0
        %1562 = vmatpush1.msra.mxu0 0.0
        %1563 = vmatprep.subr.mxu0 0.0
        %1564 = vmatpush1.msra.mxu0 0.0
        %1565 = vmatprep.subr.mxu0 0.0
        %1566 = vmatpush1.msra.mxu0 0.0
        %1567 = vmatprep.subr.mxu0 0.0
        %1568 = vmatpush1.msra.mxu0 0.0
        %1569 = vmatprep.subr.mxu0 0.0
        %1570 = vmatpush1.msra.mxu0 0.0
        %1571 = vmatprep.subr.mxu0 0.0
        %1572 = vmatpush1.msra.mxu0 0.0
        %1573 = vmatprep.subr.mxu0 0.0
        %1574 = vmatpush1.msra.mxu0 0.0
        %1575 = vmatprep.subr.mxu0 0.0
        %1576 = vmatpush1.msra.mxu0 0.0
        %1577 = vmatprep.subr.mxu0 0.0
        %1578 = vmatpush1.msra.mxu0 0.0
        %1579 = vmatprep.subr.mxu0 0.0
        %1580 = vmatpush1.msra.mxu0 0.0
        %1581 = vmatprep.subr.mxu0 0.0
        %1582 = vmatpush1.msra.mxu0 0.0
        %1583 = vmatprep.subr.mxu0 0.0
        %1584 = vmatpush1.msra.mxu0 0.0
        %v1585 = vand.u32 %v781, 4294901760
        %v1586 = vsub.f32 %v781, %v1585
        %1587 = vmatprep.subr.mxu0 %v1586
        %v1588 = vand.u32 %v780, 4294901760
        %v1589 = vsub.f32 %v780, %v1588
        %1590 = vmatpush1.msra.mxu0 %v1589
        %v1591 = vand.u32 %v779, 4294901760
        %v1592 = vsub.f32 %v779, %v1591
        %1593 = vmatprep.subr.mxu0 %v1592
        %v1594 = vand.u32 %v778, 4294901760
        %v1595 = vsub.f32 %v778, %v1594
        %1596 = vmatpush1.msra.mxu0 %v1595
        %v1597 = vand.u32 %v777, 4294901760
        %v1598 = vsub.f32 %v777, %v1597
        %1599 = vmatprep.subr.mxu0 %v1598
        %v1600 = vand.u32 %v776, 4294901760
        %v1601 = vsub.f32 %v776, %v1600
        %1602 = vmatpush1.msra.mxu0 %v1601
        %v1603 = vand.u32 %v775, 4294901760
        %v1604 = vsub.f32 %v775, %v1603
        %1605 = vmatprep.subr.mxu0 %v1604
        %v1606 = vand.u32 %v774, 4294901760
        %v1607 = vsub.f32 %v774, %v1606
        %1608 = vmatpush1.msra.mxu0 %v1607
        %1609 = vmatprep.subr.mxu0 0.0
        %1610 = vmatpush2.msra.mxu0 0.0
        %1611 = vmatprep.subr.mxu0 0.0
        %1612 = vmatpush2.msra.mxu0 0.0
        %1613 = vmatprep.subr.mxu0 0.0
        %1614 = vmatpush2.msra.mxu0 0.0
        %1615 = vmatprep.subr.mxu0 0.0
        %1616 = vmatpush2.msra.mxu0 0.0
        %1617 = vmatprep.subr.mxu0 0.0
        %1618 = vmatpush2.msra.mxu0 0.0
        %1619 = vmatprep.subr.mxu0 0.0
        %1620 = vmatpush2.msra.mxu0 0.0
        %1621 = vmatprep.subr.mxu0 0.0
        %1622 = vmatpush2.msra.mxu0 0.0
        %1623 = vmatprep.subr.mxu0 0.0
        %1624 = vmatpush2.msra.mxu0 0.0
        %1625 = vmatprep.subr.mxu0 0.0
        %1626 = vmatpush2.msra.mxu0 0.0
        %1627 = vmatprep.subr.mxu0 0.0
        %1628 = vmatpush2.msra.mxu0 0.0
        %1629 = vmatprep.subr.mxu0 0.0
        %1630 = vmatpush2.msra.mxu0 0.0
        %1631 = vmatprep.subr.mxu0 0.0
        %1632 = vmatpush2.msra.mxu0 0.0
        %1633 = vmatprep.subr.mxu0 0.0
        %1634 = vmatpush2.msra.mxu0 0.0
        %1635 = vmatprep.subr.mxu0 0.0
        %1636 = vmatpush2.msra.mxu0 0.0
        %1637 = vmatprep.subr.mxu0 0.0
        %1638 = vmatpush2.msra.mxu0 0.0
        %1639 = vmatprep.subr.mxu0 0.0
        %1640 = vmatpush2.msra.mxu0 0.0
        %1641 = vmatprep.mubr.f32.mxu0 0.0
        %v1642 = vand.u32 %v1342, 4294901760
        %v1643 = vsub.f32 %v1342, %v1642
        %1644 = vmatmul.mubr.f32.gmra.mxu0 %v1643
        %v1645 = vpop.f32.mrf.mxu0
        %v1646 = vadd.f32 %v1550, %v1645
        %v1647 = vpop.f32.mrf.mxu0
        %v1648 = vadd.f32 %v1552, %v1647
        %1649 = vmatprep.mubr.f32.mxu0 0.0
        %v1650 = vand.u32 %v1345, 4294901760
        %v1651 = vsub.f32 %v1345, %v1650
        %1652 = vmatmul.mubr.f32.gmra.mxu0 %v1651
        %v1653 = vpop.f32.mrf.mxu0
        %v1654 = vadd.f32 %v1557, %v1653
        %v1655 = vpop.f32.mrf.mxu0
        %v1656 = vadd.f32 %v1559, %v1655
        %1657 = vdwg.mxu0
        %1658 = vmatprep.subr.mxu0 0.0
        %1659 = vmatpush1.msra.mxu0 0.0
        %1660 = vmatprep.subr.mxu0 0.0
        %1661 = vmatpush1.msra.mxu0 0.0
        %1662 = vmatprep.subr.mxu0 0.0
        %1663 = vmatpush1.msra.mxu0 0.0
        %1664 = vmatprep.subr.mxu0 0.0
        %1665 = vmatpush1.msra.mxu0 0.0
        %1666 = vmatprep.subr.mxu0 0.0
        %1667 = vmatpush1.msra.mxu0 0.0
        %1668 = vmatprep.subr.mxu0 0.0
        %1669 = vmatpush1.msra.mxu0 0.0
        %1670 = vmatprep.subr.mxu0 0.0
        %1671 = vmatpush1.msra.mxu0 0.0
        %1672 = vmatprep.subr.mxu0 0.0
        %1673 = vmatpush1.msra.mxu0 0.0
        %1674 = vmatprep.subr.mxu0 0.0
        %1675 = vmatpush1.msra.mxu0 0.0
        %1676 = vmatprep.subr.mxu0 0.0
        %1677 = vmatpush1.msra.mxu0 0.0
        %1678 = vmatprep.subr.mxu0 0.0
        %1679 = vmatpush1.msra.mxu0 0.0
        %1680 = vmatprep.subr.mxu0 0.0
        %1681 = vmatpush1.msra.mxu0 0.0
        %v1682 = vand.u32 %v781, 4294901760
        %1683 = vmatprep.subr.mxu0 %v1682
        %v1684 = vand.u32 %v780, 4294901760
        %1685 = vmatpush1.msra.mxu0 %v1684
        %v1686 = vand.u32 %v779, 4294901760
        %1687 = vmatprep.subr.mxu0 %v1686
        %v1688 = vand.u32 %v778, 4294901760
        %1689 = vmatpush1.msra.mxu0 %v1688
        %v1690 = vand.u32 %v777, 4294901760
        %1691 = vmatprep.subr.mxu0 %v1690
        %v1692 = vand.u32 %v776, 4294901760
        %1693 = vmatpush1.msra.mxu0 %v1692
        %v1694 = vand.u32 %v775, 4294901760
        %1695 = vmatprep.subr.mxu0 %v1694
        %v1696 = vand.u32 %v774, 4294901760
        %1697 = vmatpush1.msra.mxu0 %v1696
        %1698 = vmatprep.subr.mxu0 0.0
        %1699 = vmatpush2.msra.mxu0 0.0
        %1700 = vmatprep.subr.mxu0 0.0
        %1701 = vmatpush2.msra.mxu0 0.0
        %1702 = vmatprep.subr.mxu0 0.0
        %1703 = vmatpush2.msra.mxu0 0.0
        %1704 = vmatprep.subr.mxu0 0.0
        %1705 = vmatpush2.msra.mxu0 0.0
        %1706 = vmatprep.subr.mxu0 0.0
        %1707 = vmatpush2.msra.mxu0 0.0
        %1708 = vmatprep.subr.mxu0 0.0
        %1709 = vmatpush2.msra.mxu0 0.0
        %1710 = vmatprep.subr.mxu0 0.0
        %1711 = vmatpush2.msra.mxu0 0.0
        %1712 = vmatprep.subr.mxu0 0.0
        %1713 = vmatpush2.msra.mxu0 0.0
        %1714 = vmatprep.subr.mxu0 0.0
        %1715 = vmatpush2.msra.mxu0 0.0
        %1716 = vmatprep.subr.mxu0 0.0
        %1717 = vmatpush2.msra.mxu0 0.0
        %1718 = vmatprep.subr.mxu0 0.0
        %1719 = vmatpush2.msra.mxu0 0.0
        %1720 = vmatprep.subr.mxu0 0.0
        %1721 = vmatpush2.msra.mxu0 0.0
        %1722 = vmatprep.subr.mxu0 0.0
        %1723 = vmatpush2.msra.mxu0 0.0
        %1724 = vmatprep.subr.mxu0 0.0
        %1725 = vmatpush2.msra.mxu0 0.0
        %1726 = vmatprep.subr.mxu0 0.0
        %1727 = vmatpush2.msra.mxu0 0.0
        %1728 = vmatprep.subr.mxu0 0.0
        %1729 = vmatpush2.msra.mxu0 0.0
        %1730 = vmatprep.mubr.f32.mxu0 0.0
        %v1731 = vand.u32 %v1342, 4294901760
        %v1732 = vsub.f32 %v1342, %v1731
        %v1733 = vand.u32 %v1732, 4294901760
        %1734 = vmatmul.mubr.f32.gmra.mxu0 %v1733
        %v1735 = vpop.f32.mrf.mxu0
        %v1736 = vadd.f32 %v1646, %v1735
        %v1737 = vpop.f32.mrf.mxu0
        %v1738 = vadd.f32 %v1648, %v1737
        %1739 = vmatprep.mubr.f32.mxu0 0.0
        %v1740 = vand.u32 %v1345, 4294901760
        %v1741 = vsub.f32 %v1345, %v1740
        %v1742 = vand.u32 %v1741, 4294901760
        %1743 = vmatmul.mubr.f32.gmra.mxu0 %v1742
        %v1744 = vpop.f32.mrf.mxu0
        %v1745 = vadd.f32 %v1654, %v1744
        %v1746 = vpop.f32.mrf.mxu0
        %v1747 = vadd.f32 %v1656, %v1746
        %1748 = vdwg.mxu0
        %1749 = vmatprep.subr.mxu0 0.0
        %1750 = vmatpush1.msra.mxu0 0.0
        %1751 = vmatprep.subr.mxu0 0.0
        %1752 = vmatpush1.msra.mxu0 0.0
        %1753 = vmatprep.subr.mxu0 0.0
        %1754 = vmatpush1.msra.mxu0 0.0
        %1755 = vmatprep.subr.mxu0 0.0
        %1756 = vmatpush1.msra.mxu0 0.0
        %1757 = vmatprep.subr.mxu0 0.0
        %1758 = vmatpush1.msra.mxu0 0.0
        %1759 = vmatprep.subr.mxu0 0.0
        %1760 = vmatpush1.msra.mxu0 0.0
        %1761 = vmatprep.subr.mxu0 0.0
        %1762 = vmatpush1.msra.mxu0 0.0
        %1763 = vmatprep.subr.mxu0 0.0
        %1764 = vmatpush1.msra.mxu0 0.0
        %1765 = vmatprep.subr.mxu0 0.0
        %1766 = vmatpush1.msra.mxu0 0.0
        %1767 = vmatprep.subr.mxu0 0.0
        %1768 = vmatpush1.msra.mxu0 0.0
        %1769 = vmatprep.subr.mxu0 0.0
        %1770 = vmatpush1.msra.mxu0 0.0
        %1771 = vmatprep.subr.mxu0 0.0
        %1772 = vmatpush1.msra.mxu0 0.0
        %v1773 = vand.u32 %v781, 4294901760
        %v1774 = vsub.f32 %v781, %v1773
        %v1775 = vand.u32 %v1774, 4294901760
        %1776 = vmatprep.subr.mxu0 %v1775
        %v1777 = vand.u32 %v780, 4294901760
        %v1778 = vsub.f32 %v780, %v1777
        %v1779 = vand.u32 %v1778, 4294901760
        %1780 = vmatpush1.msra.mxu0 %v1779
        %v1781 = vand.u32 %v779, 4294901760
        %v1782 = vsub.f32 %v779, %v1781
        %v1783 = vand.u32 %v1782, 4294901760
        %1784 = vmatprep.subr.mxu0 %v1783
        %v1785 = vand.u32 %v778, 4294901760
        %v1786 = vsub.f32 %v778, %v1785
        %v1787 = vand.u32 %v1786, 4294901760
        %1788 = vmatpush1.msra.mxu0 %v1787
        %v1789 = vand.u32 %v777, 4294901760
        %v1790 = vsub.f32 %v777, %v1789
        %v1791 = vand.u32 %v1790, 4294901760
        %1792 = vmatprep.subr.mxu0 %v1791
        %v1793 = vand.u32 %v776, 4294901760
        %v1794 = vsub.f32 %v776, %v1793
        %v1795 = vand.u32 %v1794, 4294901760
        %1796 = vmatpush1.msra.mxu0 %v1795
        %v1797 = vand.u32 %v775, 4294901760
        %v1798 = vsub.f32 %v775, %v1797
        %v1799 = vand.u32 %v1798, 4294901760
        %1800 = vmatprep.subr.mxu0 %v1799
        %v1801 = vand.u32 %v774, 4294901760
        %v1802 = vsub.f32 %v774, %v1801
        %v1803 = vand.u32 %v1802, 4294901760
        %1804 = vmatpush1.msra.mxu0 %v1803
        %1805 = vmatprep.subr.mxu0 0.0
        %1806 = vmatpush2.msra.mxu0 0.0
        %1807 = vmatprep.subr.mxu0 0.0
        %1808 = vmatpush2.msra.mxu0 0.0
        %1809 = vmatprep.subr.mxu0 0.0
        %1810 = vmatpush2.msra.mxu0 0.0
        %1811 = vmatprep.subr.mxu0 0.0
        %1812 = vmatpush2.msra.mxu0 0.0
        %1813 = vmatprep.subr.mxu0 0.0
        %1814 = vmatpush2.msra.mxu0 0.0
        %1815 = vmatprep.subr.mxu0 0.0
        %1816 = vmatpush2.msra.mxu0 0.0
        %1817 = vmatprep.subr.mxu0 0.0
        %1818 = vmatpush2.msra.mxu0 0.0
        %1819 = vmatprep.subr.mxu0 0.0
        %1820 = vmatpush2.msra.mxu0 0.0
        %1821 = vmatprep.subr.mxu0 0.0
        %1822 = vmatpush2.msra.mxu0 0.0
        %1823 = vmatprep.subr.mxu0 0.0
        %1824 = vmatpush2.msra.mxu0 0.0
        %1825 = vmatprep.subr.mxu0 0.0
        %1826 = vmatpush2.msra.mxu0 0.0
        %1827 = vmatprep.subr.mxu0 0.0
        %1828 = vmatpush2.msra.mxu0 0.0
        %1829 = vmatprep.subr.mxu0 0.0
        %1830 = vmatpush2.msra.mxu0 0.0
        %1831 = vmatprep.subr.mxu0 0.0
        %1832 = vmatpush2.msra.mxu0 0.0
        %1833 = vmatprep.subr.mxu0 0.0
        %1834 = vmatpush2.msra.mxu0 0.0
        %1835 = vmatprep.subr.mxu0 0.0
        %1836 = vmatpush2.msra.mxu0 0.0
        %1837 = vmatprep.mubr.f32.mxu0 0.0
        %v1838 = vand.u32 %v1342, 4294901760
        %1839 = vmatmul.mubr.f32.gmra.mxu0 %v1838
        %v1840 = vpop.f32.mrf.mxu0
        %v1841 = vadd.f32 %v1736, %v1840
        %v1842 = vpop.f32.mrf.mxu0
        %v1843 = vadd.f32 %v1738, %v1842
        %1844 = vmatprep.mubr.f32.mxu0 0.0
        %v1845 = vand.u32 %v1345, 4294901760
        %1846 = vmatmul.mubr.f32.gmra.mxu0 %v1845
        %v1847 = vpop.f32.mrf.mxu0
        %v1848 = vadd.f32 %v1745, %v1847
        %v1849 = vpop.f32.mrf.mxu0
        %v1850 = vadd.f32 %v1747, %v1849
        %1851 = vdwg.mxu0
        %1852 = vmatprep.subr.mxu0 0.0
        %1853 = vmatpush1.msra.mxu0 0.0
        %1854 = vmatprep.subr.mxu0 0.0
        %1855 = vmatpush1.msra.mxu0 0.0
        %1856 = vmatprep.subr.mxu0 0.0
        %1857 = vmatpush1.msra.mxu0 0.0
        %1858 = vmatprep.subr.mxu0 0.0
        %1859 = vmatpush1.msra.mxu0 0.0
        %1860 = vmatprep.subr.mxu0 0.0
        %1861 = vmatpush1.msra.mxu0 0.0
        %1862 = vmatprep.subr.mxu0 0.0
        %1863 = vmatpush1.msra.mxu0 0.0
        %1864 = vmatprep.subr.mxu0 0.0
        %1865 = vmatpush1.msra.mxu0 0.0
        %1866 = vmatprep.subr.mxu0 0.0
        %1867 = vmatpush1.msra.mxu0 0.0
        %1868 = vmatprep.subr.mxu0 0.0
        %1869 = vmatpush1.msra.mxu0 0.0
        %1870 = vmatprep.subr.mxu0 0.0
        %1871 = vmatpush1.msra.mxu0 0.0
        %1872 = vmatprep.subr.mxu0 0.0
        %1873 = vmatpush1.msra.mxu0 0.0
        %1874 = vmatprep.subr.mxu0 0.0
        %1875 = vmatpush1.msra.mxu0 0.0
        %v1876 = vand.u32 %v781, 4294901760
        %1877 = vmatprep.subr.mxu0 %v1876
        %v1878 = vand.u32 %v780, 4294901760
        %1879 = vmatpush1.msra.mxu0 %v1878
        %v1880 = vand.u32 %v779, 4294901760
        %1881 = vmatprep.subr.mxu0 %v1880
        %v1882 = vand.u32 %v778, 4294901760
        %1883 = vmatpush1.msra.mxu0 %v1882
        %v1884 = vand.u32 %v777, 4294901760
        %1885 = vmatprep.subr.mxu0 %v1884
        %v1886 = vand.u32 %v776, 4294901760
        %1887 = vmatpush1.msra.mxu0 %v1886
        %v1888 = vand.u32 %v775, 4294901760
        %1889 = vmatprep.subr.mxu0 %v1888
        %v1890 = vand.u32 %v774, 4294901760
        %1891 = vmatpush1.msra.mxu0 %v1890
        %1892 = vmatprep.subr.mxu0 0.0
        %1893 = vmatpush2.msra.mxu0 0.0
        %1894 = vmatprep.subr.mxu0 0.0
        %1895 = vmatpush2.msra.mxu0 0.0
        %1896 = vmatprep.subr.mxu0 0.0
        %1897 = vmatpush2.msra.mxu0 0.0
        %1898 = vmatprep.subr.mxu0 0.0
        %1899 = vmatpush2.msra.mxu0 0.0
        %1900 = vmatprep.subr.mxu0 0.0
        %1901 = vmatpush2.msra.mxu0 0.0
        %1902 = vmatprep.subr.mxu0 0.0
        %1903 = vmatpush2.msra.mxu0 0.0
        %1904 = vmatprep.subr.mxu0 0.0
        %1905 = vmatpush2.msra.mxu0 0.0
        %1906 = vmatprep.subr.mxu0 0.0
        %1907 = vmatpush2.msra.mxu0 0.0
        %1908 = vmatprep.subr.mxu0 0.0
        %1909 = vmatpush2.msra.mxu0 0.0
        %1910 = vmatprep.subr.mxu0 0.0
        %1911 = vmatpush2.msra.mxu0 0.0
        %1912 = vmatprep.subr.mxu0 0.0
        %1913 = vmatpush2.msra.mxu0 0.0
        %1914 = vmatprep.subr.mxu0 0.0
        %1915 = vmatpush2.msra.mxu0 0.0
        %1916 = vmatprep.subr.mxu0 0.0
        %1917 = vmatpush2.msra.mxu0 0.0
        %1918 = vmatprep.subr.mxu0 0.0
        %1919 = vmatpush2.msra.mxu0 0.0
        %1920 = vmatprep.subr.mxu0 0.0
        %1921 = vmatpush2.msra.mxu0 0.0
        %1922 = vmatprep.subr.mxu0 0.0
        %1923 = vmatpush2.msra.mxu0 0.0
        %1924 = vmatprep.mubr.f32.mxu0 0.0
        %v1925 = vand.u32 %v1342, 4294901760
        %1926 = vmatmul.mubr.f32.gmra.mxu0 %v1925
        %v1927 = vpop.f32.mrf.mxu0
        %v1928 = vadd.f32 %v1841, %v1927
        %v1929 = vpop.f32.mrf.mxu0
        %v1930 = vadd.f32 %v1843, %v1929
        %1931 = vmatprep.mubr.f32.mxu0 0.0
        %v1932 = vand.u32 %v1345, 4294901760
        %1933 = vmatmul.mubr.f32.gmra.mxu0 %v1932
        %v1934 = vpop.f32.mrf.mxu0
        %v1935 = vadd.f32 %v1848, %v1934
        %v1936 = vpop.f32.mrf.mxu0
        %v1937 = vadd.f32 %v1850, %v1936
        %1938 = vdwg.mxu0
        %v1939 = vlaneseq
        %v1940 = vshrl.u32 %v1939, 7
        %v1941 = vsub.s32 0, %v1940
        %v1942 = vrot.slane %v1337, %v1941
        %v1943 = vlaneseq
        %v1944 = vshrl.u32 %v1943, 7
        %v1945 = vsub.s32 0, %v1944
        %v1946 = vrot.slane %v1338, %v1945
        %v1947 = vmul.f32 %v1928, %v1942
        %v1948 = vmul.f32 %v1930, %v1946
        %v1949 = vmul.f32 %v1935, %v1942
        %v1950 = vmul.f32 %v1937, %v1946
        %v1951 = vld [vmem:[%s2] sm:$0xff]
        %v1952 = vld [vmem:[%s2 + $0x8] sm:$0xff]
        %1954 = vset.pattern.permute.xlu0 0
        %1955 = vperm.xlu0 %1954, %v1951
        %v1956 = vpop.permute.xlu0 %1955
        %1959 = vset.pattern.permute.xlu0 0
        %1960 = vperm.xlu0 %1959, %v1952
        %v1961 = vpop.permute.xlu0 %1960
        %v1963 = vadd.f32 %v1947, %v1956
        %v1964 = vadd.f32 %v1948, %v1956
        %v1965 = vadd.f32 %v1949, %v1961
        %v1966 = vadd.f32 %v1950, %v1961
        %v1967 = vand.u32 2147483647, %v1963
        %v1968 = vand.u32 2147483647, %v1964
        %v1969 = vand.u32 2147483647, %v1965
        %v1970 = vand.u32 2147483647, %v1966
        %v1971 = vmul.f32 %v1967, 0.70710677
        %v1972 = vmul.f32 %v1968, 0.70710677
        %v1973 = vmul.f32 %v1969, 0.70710677
        %v1974 = vmul.f32 %v1970, 0.70710677
        %v1975 = vmul.f32 %v1971, 0.3275911
        %v1976 = vmul.f32 %v1972, 0.3275911
        %v1977 = vmul.f32 %v1973, 0.3275911
        %v1978 = vmul.f32 %v1974, 0.3275911
        %v1979 = vadd.f32 %v1975, 1.0
        %v1980 = vadd.f32 %v1976, 1.0
        %v1981 = vadd.f32 %v1977, 1.0
        %v1982 = vadd.f32 %v1978, 1.0
        %v1983 = vrcp.pop %v1979
        %v1984 = vmul.f32 1.0, %v1983
        %v1985 = vrcp.pop %v1980
        %v1986 = vmul.f32 1.0, %v1985
        %v1987 = vrcp.pop %v1981
        %v1988 = vmul.f32 1.0, %v1987
        %v1989 = vrcp.pop %v1982
        %v1990 = vmul.f32 1.0, %v1989
        %v1991 = vmul.f32 %v1984, 0.5307027
        %v1992 = vmul.f32 %v1986, 0.5307027
        %v1993 = vmul.f32 %v1988, 0.5307027
        %v1994 = vmul.f32 %v1990, 0.5307027
        %v1995 = vadd.f32 %v1991, -0.72657603
        %v1996 = vadd.f32 %v1992, -0.72657603
        %v1997 = vadd.f32 %v1993, -0.72657603
        %v1998 = vadd.f32 %v1994, -0.72657603
        %v1999 = vmul.f32 %v1984, %v1995
        %v2000 = vmul.f32 %v1986, %v1996
        %v2001 = vmul.f32 %v1988, %v1997
        %v2002 = vmul.f32 %v1990, %v1998
        %v2003 = vadd.f32 %v1999, 0.7107069
        %v2004 = vadd.f32 %v2000, 0.7107069
        %v2005 = vadd.f32 %v2001, 0.7107069
        %v2006 = vadd.f32 %v2002, 0.7107069
        %v2007 = vmul.f32 %v1984, %v2003
        %v2008 = vmul.f32 %v1986, %v2004
        %v2009 = vmul.f32 %v1988, %v2005
        %v2010 = vmul.f32 %v1990, %v2006
        %v2011 = vadd.f32 %v2007, -0.14224836
        %v2012 = vadd.f32 %v2008, -0.14224836
        %v2013 = vadd.f32 %v2009, -0.14224836
        %v2014 = vadd.f32 %v2010, -0.14224836
        %v2015 = vmul.f32 %v1984, %v2011
        %v2016 = vmul.f32 %v1986, %v2012
        %v2017 = vmul.f32 %v1988, %v2013
        %v2018 = vmul.f32 %v1990, %v2014
        %v2019 = vadd.f32 %v2015, 0.1274148
        %v2020 = vadd.f32 %v2016, 0.1274148
        %v2021 = vadd.f32 %v2017, 0.1274148
        %v2022 = vadd.f32 %v2018, 0.1274148
        %v2023 = vmul.f32 %v1984, %v2019
        %v2024 = vmul.f32 %v1986, %v2020
        %v2025 = vmul.f32 %v1988, %v2021
        %v2026 = vmul.f32 %v1990, %v2022
        %v2027 = vmul.f32 %v1971, %v1971
        %v2028 = vmul.f32 %v1972, %v1972
        %v2029 = vmul.f32 %v1973, %v1973
        %v2030 = vmul.f32 %v1974, %v1974
        %v2031 = vsub.f32 0.0, %v2027
        %v2032 = vsub.f32 0.0, %v2028
        %v2033 = vsub.f32 0.0, %v2029
        %v2034 = vsub.f32 0.0, %v2030
        %v2035 = vmul.f32 %v2031, 1.442695
        %v2036 = vpow.pop %v2035
        %v2037 = vmul.f32 %v2032, 1.442695
        %v2038 = vpow.pop %v2037
        %v2039 = vmul.f32 %v2033, 1.442695
        %v2040 = vpow.pop %v2039
        %v2041 = vmul.f32 %v2034, 1.442695
        %v2042 = vpow.pop %v2041
        %v2043 = vmul.f32 %v2023, %v2036
        %v2044 = vmul.f32 %v2024, %v2038
        %v2045 = vmul.f32 %v2025, %v2040
        %v2046 = vmul.f32 %v2026, %v2042
        %vm2047 = vcmp.lt.f32.partialorder %v1963, 0.0
        %vm2048 = vcmp.lt.f32.partialorder %v1964, 0.0
        %vm2049 = vcmp.lt.f32.partialorder %v1965, 0.0
        %vm2050 = vcmp.lt.f32.partialorder %v1966, 0.0
        %v2051 = vsub.f32 1.0, %v2043
        %v2052 = vsub.f32 1.0, %v2044
        %v2053 = vsub.f32 1.0, %v2045
        %v2054 = vsub.f32 1.0, %v2046
        %v2055 = vsel %vm2047, %v2043, %v2051
        %v2056 = vsel %vm2048, %v2044, %v2052
        %v2057 = vsel %vm2049, %v2045, %v2053
        %v2058 = vsel %vm2050, %v2046, %v2054
        %v2059 = vmul.f32 %v1963, %v2055
        %v2060 = vmul.f32 %v1964, %v2056
        %v2061 = vmul.f32 %v1965, %v2057
        %v2062 = vmul.f32 %v1966, %v2058
        %2063 = vst [vmem:[%s206] sm:$0xff] %v2059
        %2064 = vst [vmem:[%s206 + $0x8] sm:$0xff] %v2060
        %2065 = vst [vmem:[%s206 + $0x10] sm:$0xff] %v2061
        %2066 = vst [vmem:[%s206 + $0x18] sm:$0xff] %v2062
        %s2067 = sand.u32 %s112, 1
        %s2068 = scalar_lea.sflag [#allocation4], %s2067
        %s2069 = sand.u32 %s112, 1
        %s2070 = smul.addr %s2069, 32
        %s2071 = scalar_lea.vmem [#allocation5], %s2070
        // Predicated region
        $region37: #{tpu_custom_call.1} parent=31 // pred_check
          %p2072 = pneg %p122
        $region38: #{tpu_custom_call.1} parent=31 // pred_check_branch
          %2074 = sbr.rel (%p2072) target = $region40
        $region39: #{tpu_custom_call.1} parent=31 // pred_region
          %s2075 = smul.u32 2, %s25
          %s2077 = ssub.s32 512, 512
          %2078 = vsyncadd %s2068, %s2077
          %s2079 = smul.addr %s24, 4
          %s2080 = sadd.s32 %s2075, %s2079
          %s2081 = smul.addr %s2080, 128
          %s2082 = scalar_lea.hbm %s3, %s2081
          %s2083 = sshll.u32 %s2071, 4
          %s2084 = int_to_ptr.vmem [resolvable:$true] %s2083
          %2089 = dma.vmem_to_hbm [thread:$0]  %s2084, 512, %s2082, %s2068, 256, 256, 16
        $region40: #{tpu_custom_call.1} parent=31 // pred_fallthru
          _
      $region32: #{tpu_custom_call.1} parent=5 // pred_fallthru
        _
      %p2090 = scmp.le.s32.totalorder 2, %s15
      // Predicated region
      $region41: #{tpu_custom_call.1} parent=5 // pred_check
        %p2091 = pneg %p2090
      $region42: #{tpu_custom_call.1} parent=5 // pred_check_branch
        %2093 = sbr.rel (%p2091) target = $region44
      $region43: #{tpu_custom_call.1} parent=5 // pred_region
        %s2094 = ssub.s32 %s15, 2
        // Predicated region
        $region45: #{tpu_custom_call.1} parent=43 // pred_check
          %p2095 = pneg %p128
        $region46: #{tpu_custom_call.1} parent=43 // pred_check_branch
          %2097 = sbr.rel (%p2095) target = $region48
        $region47: #{tpu_custom_call.1} parent=43 // pred_region
          %s2098 = sand.u32 %s113, 1
          %s2099 = scalar_lea.sflag [#allocation4], %s2098
          %s2100 = sand.u32 %s113, 1
          %s2101 = smul.addr %s2100, 32
          %s2102 = scalar_lea.vmem [#allocation5], %s2101
          %2103 = dma.done %s2099, 512
        $region48: #{tpu_custom_call.1} parent=43 // pred_fallthru
          _
      $region44: #{tpu_custom_call.1} parent=5 // pred_fallthru
        _
    $region6: #{tpu_custom_call.1} parent=1 // loop_footer
      %s19 = sadd.s32 1, %s15
    $region7: #{tpu_custom_call.1} parent=1 // loop_footer_branch
      %14 = sbr.rel target = $region3
    $region8: #{tpu_custom_call.1} parent=1 // loop_exit
      _
    %2104 = vsyncpa [#allocation3], 1
    %s2105 = scalar_lea.sflag [#allocation3], 1
    %2106 = vsyncpa %s2105, 1
    %2107 = vsyncpa [#allocation4], 1
    %s2108 = scalar_lea.sflag [#allocation4], 1
    %2109 = vsyncpa %s2108, 1

</llo_original>
